<compile_context>
chip_gen: v7x
topology: tpu7x:2x2x1
jax: 0.10.0
libtpu: 0.0.40
codegen_flags: <defaults>
</compile_context>

<pallas_src>
import math
from functools import partial

import jax
import jax.numpy as jnp
from jax.experimental import pallas as pl
from jax.experimental.pallas import tpu as pltpu


# ----------------------------- Pallas kernel -------------------------------- #
def _mha_kernel(q_ref, k_ref, v_ref,
                wq_ref, bq_ref, wk_ref, bk_ref, wv_ref, bv_ref,
                wo_ref, bo_ref,
                out_ref, *rest,
                num_heads, compute_dtype, has_attn):
    if has_attn:
        attn_ref, q_sc, k_sc, v_sc, merged_sc = rest
    else:
        attn_ref = None
        q_sc, k_sc, v_sc, merged_sc = rest

    H = num_heads
    S = k_ref.shape[1]
    tq = q_ref.shape[1]
    E = wq_ref.shape[1]
    hd = E // H
    cdt = compute_dtype

    qt = pl.program_id(1)

    # ---- K/V projections: fused lane-dense (S,Din)@(Din,E), once per batch --
    @pl.when(qt == 0)
    def _():
        k = jnp.dot(k_ref[0], wk_ref[...],
                    preferred_element_type=jnp.float32) + bk_ref[...]
        v = jnp.dot(v_ref[0], wv_ref[...],
                    preferred_element_type=jnp.float32) + bv_ref[...]
        k = k.astype(cdt)
        v = v.astype(cdt)
        for h in range(H):                      # single head-split relayout
            k_sc[h] = k[:, h * hd:(h + 1) * hd]
            v_sc[h] = v[:, h * hd:(h + 1) * hd]

    # ---- Q projection for this query tile (scale folded into Wq/bq) ---------
    q = jnp.dot(q_ref[0], wq_ref[...],
                preferred_element_type=jnp.float32) + bq_ref[...]
    q = q.astype(cdt)
    for h in range(H):
        q_sc[h] = q[:, h * hd:(h + 1) * hd]

    # ---- attention logits + numerically-stable f32 softmax ------------------
    logits = jnp.einsum('htd,hsd->hts', q_sc[...], k_sc[...],
                        preferred_element_type=jnp.float32)       # (H, tq, S)
    m = jnp.max(logits, axis=-1, keepdims=True)
    p = jnp.exp(logits - m)
    denom = jnp.sum(p, axis=-1, keepdims=True)

    if attn_ref is not None:
        attn = p / denom                   # exact normalization when returned
        attn_ref[0] = attn.astype(attn_ref.dtype)
        vals = jnp.einsum('hts,hsd->htd', attn.astype(cdt), v_sc[...],
                          preferred_element_type=jnp.float32)     # (H, tq, hd)
    else:
        # Normalize AFTER PV: H*tq*hd multiplies instead of H*tq*S.
        vals = jnp.einsum('hts,hsd->htd', p.astype(cdt), v_sc[...],
                          preferred_element_type=jnp.float32)
        vals = vals * pl.reciprocal(denom, approx=True)

    # ---- merge heads into a lane-dense (tq, E) slab; one output matmul ------
    vals_c = vals.astype(cdt)
    for h in range(H):
        merged_sc[:, h * hd:(h + 1) * hd] = vals_c[h]
    out = jnp.dot(merged_sc[...], wo_ref[...],
                  preferred_element_type=jnp.float32) + bo_ref[...]
    out_ref[0] = out.astype(out_ref.dtype)


# --------------------------- sizing helpers ---------------------------------- #
def _dt_size(dt):
    return jnp.dtype(dt).itemsize


def _vmem_limit_bytes(*, S, tq, Din, E, H, hd, compute_dtype, return_attn,
                      attn_dtype, out_dtype):
    cd, f32 = _dt_size(compute_dtype), 4
    in_b = 2 * cd * (tq * Din + 2 * S * Din)                  # double-buffered
    w_b = 2 * (cd * (3 * Din * E + E * E) + f32 * 4 * E)
    out_b = 2 * _dt_size(out_dtype) * tq * E
    if return_attn:
        out_b += 2 * _dt_size(attn_dtype) * H * tq * S
    scr_b = cd * (H * tq * hd + 2 * H * S * hd + tq * E)      # persistent
    live_b = f32 * (3 * H * tq * S + 2 * S * E + 2 * tq * E + H * tq * hd)
    need = int(1.5 * (in_b + w_b + out_b + scr_b + live_b)) + (4 << 20)
    try:
        phys = int(pltpu.get_tpu_info().vmem_capacity_bytes)
    except Exception:
        phys = 128 << 20
    cap = (phys * 3) // 4              # headroom below physical VMEM
    return min(max(need, 32 << 20), cap)


def _cost_estimate(*, B, S, Din, E, H, hd, compute_dtype, return_attn,
                   attn_dtype, out_dtype):
    flops = (3 * 2 * B * S * Din * E          # Q/K/V projections
             + 2 * 2 * B * H * S * S * hd     # QK^T and PV
             + 2 * B * S * E * E)             # output projection
    transcendentals = B * H * S * S           # exp in softmax
    cd = _dt_size(compute_dtype)
    bytes_accessed = (3 * B * S * Din * cd + (3 * Din * E + E * E) * cd
                      + 4 * E * 4 + B * S * E * _dt_size(out_dtype))
    if return_attn:
        bytes_accessed += B * H * S * S * _dt_size(attn_dtype)
    return pl.CostEstimate(flops=int(flops),
                           transcendentals=int(transcendentals),
                           bytes_accessed=int(bytes_accessed))


# ------------------------------ wrapper -------------------------------------- #
def multihead_attention(key, query, value, params, num_heads, *,
                        compute_dtype=jnp.bfloat16, block_q=128,
                        return_attn=True, attn_dtype=jnp.float32,
                        out_dtype=jnp.float32):
    """key/query/value: (B, S, Din) float32.

    Returns (output (B,S,E), attn (B,H,S,S)) or just output if return_attn=False.
    MXU operands run in `compute_dtype` (bf16 default on all TPU generations);
    softmax and accumulation stay f32.
    """
    B, S, Din = value.shape
    E = params["wq"].shape[1]
    assert E % num_heads == 0, "embed_dim must be divisible by num_heads"
    hd = E // num_heads
    scale = 1.0 / math.sqrt(hd)

    # Query-tile size: tile only when it divides S and is sublane-aligned.
    if block_q % 8 == 0 and S % block_q == 0 and block_q < S:
        tq = block_q
    else:
        tq = S
    n_qt = S // tq

    # Fold the 1/sqrt(head_dim) scale into the Q projection; cast MXU operands.
    wq = (params["wq"] * scale).astype(compute_dtype)
    wk = params["wk"].astype(compute_dtype)
    wv = params["wv"].astype(compute_dtype)
    wo = params["wo"].astype(compute_dtype)
    bq = params["bq"] * scale                 # biases & softmax stay f32
    bk, bv, bo = params["bk"], params["bv"], params["bo"]

    q_in = query.astype(compute_dtype)
    k_in = key.astype(compute_dtype)
    v_in = value.astype(compute_dtype)

    kernel = partial(_mha_kernel, num_heads=num_heads,
                     compute_dtype=compute_dtype, has_attn=return_attn)

    in_specs = [
        pl.BlockSpec((1, tq, Din), lambda b, qt: (b, qt, 0)),     # query tile
        pl.BlockSpec((1, S, Din), lambda b, qt: (b, 0, 0)),       # key (full)
        pl.BlockSpec((1, S, Din), lambda b, qt: (b, 0, 0)),       # value (full)
        # Weights/biases: constant index_map -> fetched once, kept resident.
        # TODO(synk): single-buffer these (pl.Buffered(1)) to reclaim their
        #             second pipeline buffer once verified on the target jax.
        pl.BlockSpec((Din, E), lambda b, qt: (0, 0)),             # Wq (scaled)
        pl.BlockSpec((1, E), lambda b, qt: (0, 0)),               # bq (scaled)
        pl.BlockSpec((Din, E), lambda b, qt: (0, 0)),             # Wk
        pl.BlockSpec((1, E), lambda b, qt: (0, 0)),               # bk
        pl.BlockSpec((Din, E), lambda b, qt: (0, 0)),             # Wv
        pl.BlockSpec((1, E), lambda b, qt: (0, 0)),               # bv
        pl.BlockSpec((E, E), lambda b, qt: (0, 0)),               # Wo
        pl.BlockSpec((1, E), lambda b, qt: (0, 0)),               # bo
    ]

    out_shapes = [jax.ShapeDtypeStruct((B, S, E), out_dtype)]
    out_specs = [pl.BlockSpec((1, tq, E), lambda b, qt: (b, qt, 0))]
    if return_attn:
        out_shapes.append(jax.ShapeDtypeStruct((B, num_heads, S, S), attn_dtype))
        out_specs.append(
            pl.BlockSpec((1, num_heads, tq, S), lambda b, qt: (b, 0, qt, 0)))

    scratch_shapes = [
        pltpu.VMEM((num_heads, tq, hd), compute_dtype),    # q heads
        pltpu.VMEM((num_heads, S, hd), compute_dtype),     # k heads (cached)
        pltpu.VMEM((num_heads, S, hd), compute_dtype),     # v heads (cached)
        pltpu.VMEM((tq, E), compute_dtype),                # merged heads
    ]

    vmem_limit = _vmem_limit_bytes(S=S, tq=tq, Din=Din, E=E, H=num_heads,
                                   hd=hd, compute_dtype=compute_dtype,
                                   return_attn=return_attn,
                                   attn_dtype=attn_dtype, out_dtype=out_dtype)
    cost = _cost_estimate(B=B, S=S, Din=Din, E=E, H=num_heads, hd=hd,
                          compute_dtype=compute_dtype, return_attn=return_attn,
                          attn_dtype=attn_dtype, out_dtype=out_dtype)

    results = pl.pallas_call(
        kernel,
        out_shape=tuple(out_shapes),
        grid_spec=pltpu.PrefetchScalarGridSpec(
            num_scalar_prefetch=0,
            grid=(B, n_qt),
            in_specs=in_specs,
            out_specs=out_specs,
            scratch_shapes=scratch_shapes,
        ),
        compiler_params=pltpu.CompilerParams(
            # Batch axis is megacore-shardable; the query-tile axis carries the
            # cached-K/V dependency (computed at qt == 0) so it stays sequential.
            dimension_semantics=("parallel", "arbitrary"),
            vmem_limit_bytes=vmem_limit,
        ),
        cost_estimate=cost,
    )(q_in, k_in, v_in, wq, bq, wk, bk, wv, bv, wo, bo)

    if return_attn:
        return results[0], results[1]
    return results[0]


# --------------------------- parameter init ---------------------------------- #
def xavier_uniform(rng, fan_in, fan_out):
    bound = math.sqrt(6.0 / (fan_in + fan_out))
    # Stored already transposed: (in_features, out_features).
    return jax.random.uniform(rng, (fan_in, fan_out), jnp.float32, -bound, bound)


def init_params(rng, inputs_dim, embed_dim):
    ks = jax.random.split(rng, 4)
    return {
        "wq": xavier_uniform(ks[0], inputs_dim, embed_dim),
        "bq": jnp.zeros((1, embed_dim), jnp.float32),
        "wk": xavier_uniform(ks[1], inputs_dim, embed_dim),
        "bk": jnp.zeros((1, embed_dim), jnp.float32),
        "wv": xavier_uniform(ks[2], inputs_dim, embed_dim),
        "bv": jnp.zeros((1, embed_dim), jnp.float32),
        "wo": xavier_uniform(ks[3], embed_dim, embed_dim),
        "bo": jnp.zeros((1, embed_dim), jnp.float32),
    }


# --------------------------- pure-JAX reference ------------------------------- #
def reference(key, query, value, params, num_heads):
    B, S, Din = value.shape
    E = params["wq"].shape[1]
    hd = E // num_heads
    q = query @ params["wq"] + params["bq"]
    k = key @ params["wk"] + params["bk"]
    v = value @ params["wv"] + params["bv"]
    q = q.reshape(B, S, num_heads, hd).transpose(0, 2, 1, 3)
    k = k.reshape(B, S, num_heads, hd).transpose(0, 2, 1, 3)
    v = v.reshape(B, S, num_heads, hd).transpose(0, 2, 1, 3)
    logits = jnp.einsum("bhqd,bhkd->bhqk", q, k) / math.sqrt(hd)
    attn = jax.nn.softmax(logits, axis=-1)
    vals = jnp.einsum("bhqk,bhkd->bhqd", attn, v)
    vals = vals.transpose(0, 2, 1, 3).reshape(B, S, E)
    out = vals @ params["wo"] + params["bo"]
    return out, attn


# --------------------------------- main --------------------------------------- #
if __name__ == "__main__":
    B, S = 2, 8
    inputs_dim, embed_dim, num_heads = 16, 32, 4

    root = jax.random.PRNGKey(0)
    k_param, k_q, k_k, k_v = jax.random.split(root, 4)

    params = init_params(k_param, inputs_dim, embed_dim)
    query = jax.random.normal(k_q, (B, S, inputs_dim), jnp.float32)
    key = jax.random.normal(k_k, (B, S, inputs_dim), jnp.float32)
    value = jax.random.normal(k_v, (B, S, inputs_dim), jnp.float32)

    out_gold, attn_gold = reference(key, query, value, params, num_heads)

    # f32 MXU operand path.
    out, attn = multihead_attention(key, query, value, params, num_heads,
                                    compute_dtype=jnp.float32)
    out = jax.block_until_ready(out)
    attn = jax.block_until_ready(attn)
    assert jnp.allclose(out, out_gold, rtol=5e-3, atol=5e-3)
    assert jnp.allclose(attn, attn_gold, rtol=5e-3, atol=5e-3)

    # bf16 MXU operand path (default on all generations); softmax stays f32.
    out_bf, attn_bf = multihead_attention(key, query, value, params, num_heads)
    out_bf = jax.block_until_ready(out_bf)
    attn_bf = jax.block_until_ready(attn_bf)
    assert jnp.allclose(out_bf, out_gold, rtol=5e-2, atol=5e-2)
    assert jnp.allclose(attn_bf, attn_gold, rtol=5e-2, atol=5e-2)

    # Output-only path: skips the (B,H,S,S) writeback, normalizes after PV.
    out_only = multihead_attention(key, query, value, params, num_heads,
                                   return_attn=False)
    out_only = jax.block_until_ready(out_only)
    assert jnp.allclose(out_only, out_gold, rtol=5e-2, atol=5e-2)

    # Query-tiled path (grid=(B, S//tq)) with K/V cached in VMEM scratch.
    S2, block_q = 16, 8
    kq2, kk2, kv2 = jax.random.split(jax.random.PRNGKey(1), 3)
    query2 = jax.random.normal(kq2, (B, S2, inputs_dim), jnp.float32)
    key2 = jax.random.normal(kk2, (B, S2, inputs_dim), jnp.float32)
    value2 = jax.random.normal(kv2, (B, S2, inputs_dim), jnp.float32)
    out2_gold, attn2_gold = reference(key2, query2, value2, params, num_heads)
    out2, attn2 = multihead_attention(key2, query2, value2, params, num_heads,
                                      compute_dtype=jnp.float32,
                                      block_q=block_q)
    out2 = jax.block_until_ready(out2)
    attn2 = jax.block_until_ready(attn2)
    assert jnp.allclose(out2, out2_gold, rtol=5e-3, atol=5e-3)
    assert jnp.allclose(attn2, attn2_gold, rtol=5e-3, atol=5e-3)

    print("KERNEL_OK")
</pallas_src>

<mosaic_0001>
module attributes {stable_mosaic.version = 11 : i64} {
  func.func @_mha_kernel(%arg0: i32, %arg1: i32, %arg2: memref<1x8x16xf32, #tpu.memory_space<vmem>>, %arg3: memref<1x8x16xf32, #tpu.memory_space<vmem>>, %arg4: memref<1x8x16xf32, #tpu.memory_space<vmem>>, %arg5: memref<16x32xf32, #tpu.memory_space<vmem>>, %arg6: memref<1x32xf32, #tpu.memory_space<vmem>>, %arg7: memref<16x32xf32, #tpu.memory_space<vmem>>, %arg8: memref<1x32xf32, #tpu.memory_space<vmem>>, %arg9: memref<16x32xf32, #tpu.memory_space<vmem>>, %arg10: memref<1x32xf32, #tpu.memory_space<vmem>>, %arg11: memref<32x32xf32, #tpu.memory_space<vmem>>, %arg12: memref<1x32xf32, #tpu.memory_space<vmem>>, %arg13: memref<1x8x32xf32, #tpu.memory_space<vmem>>, %arg14: memref<1x4x8x8xf32, #tpu.memory_space<vmem>>, %arg15: memref<4x8x8xf32, #tpu.memory_space<vmem>>, %arg16: memref<4x8x8xf32, #tpu.memory_space<vmem>>, %arg17: memref<4x8x8xf32, #tpu.memory_space<vmem>>, %arg18: memref<8x32xf32, #tpu.memory_space<vmem>>) attributes {dimension_semantics = [#tpu.dimension_semantics<parallel>, #tpu.dimension_semantics<arbitrary>], iteration_bounds = array<i64: 2, 1>, scalar_prefetch = 0 : i64, scratch_operands = 4 : i64, tpu.core_type = #tpu.core_type<tc>, window_params = [{transform_indices = @transform_0, window_bounds = array<i64: 1, 8, 16>}, {transform_indices = @transform_1, window_bounds = array<i64: 1, 8, 16>}, {transform_indices = @transform_2, window_bounds = array<i64: 1, 8, 16>}, {pipeline_mode = #tpu.pipeline_mode<synchronous>, transform_indices = @transform_3, window_bounds = array<i64: 16, 32>}, {pipeline_mode = #tpu.pipeline_mode<synchronous>, transform_indices = @transform_4, window_bounds = array<i64: 1, 32>}, {pipeline_mode = #tpu.pipeline_mode<synchronous>, transform_indices = @transform_5, window_bounds = array<i64: 16, 32>}, {pipeline_mode = #tpu.pipeline_mode<synchronous>, transform_indices = @transform_6, window_bounds = array<i64: 1, 32>}, {pipeline_mode = #tpu.pipeline_mode<synchronous>, transform_indices = @transform_7, window_bounds = array<i64: 16, 32>}, {pipeline_mode = #tpu.pipeline_mode<synchronous>, transform_indices = @transform_8, window_bounds = array<i64: 1, 32>}, {pipeline_mode = #tpu.pipeline_mode<synchronous>, transform_indices = @transform_9, window_bounds = array<i64: 32, 32>}, {pipeline_mode = #tpu.pipeline_mode<synchronous>, transform_indices = @transform_10, window_bounds = array<i64: 1, 32>}, {transform_indices = @transform_11, window_bounds = array<i64: 1, 8, 32>}, {transform_indices = @transform_12, window_bounds = array<i64: 1, 4, 8, 8>}]} {
    %c0_i32 = arith.constant 0 : i32
    %0 = arith.cmpi eq, %arg1, %c0_i32 : i32
    %1 = arith.extui %0 : i1 to i32
    %c0_i32_0 = arith.constant 0 : i32
    %2 = arith.cmpi ne, %1, %c0_i32_0 : i32
    scf.if %2 {
      %c0_48 = arith.constant 0 : index
      %c0_49 = arith.constant 0 : index
      %c0_50 = arith.constant 0 : index
      %64 = vector.load %arg3[%c0_48, %c0_49, %c0_50] : memref<1x8x16xf32, #tpu.memory_space<vmem>>, vector<1x8x16xf32>
      %65 = vector.shape_cast %64 : vector<1x8x16xf32> to vector<8x16xf32>
      %c0_51 = arith.constant 0 : index
      %c0_52 = arith.constant 0 : index
      %66 = vector.load %arg7[%c0_51, %c0_52] : memref<16x32xf32, #tpu.memory_space<vmem>>, vector<16x32xf32>
      %cst_53 = arith.constant dense<0.000000e+00> : vector<8x32xf32>
      %67 = tpu.matmul %65, %66, %cst_53 {dimension_numbers = #tpu.dot_dimension_numbers<[1], [0], [0], [1], [0, 0, 1, 1], [], []>} : vector<8x16xf32>, vector<16x32xf32>, vector<8x32xf32> -> vector<8x32xf32>
      %c0_54 = arith.constant 0 : index
      %c0_55 = arith.constant 0 : index
      %68 = vector.load %arg8[%c0_54, %c0_55] : memref<1x32xf32, #tpu.memory_space<vmem>>, vector<1x32xf32>
      %69 = vector.broadcast %68 : vector<1x32xf32> to vector<8x32xf32>
      %70 = arith.addf %67, %69 : vector<8x32xf32>
      %c0_56 = arith.constant 0 : index
      %c0_57 = arith.constant 0 : index
      %c0_58 = arith.constant 0 : index
      %71 = vector.load %arg4[%c0_56, %c0_57, %c0_58] : memref<1x8x16xf32, #tpu.memory_space<vmem>>, vector<1x8x16xf32>
      %72 = vector.shape_cast %71 : vector<1x8x16xf32> to vector<8x16xf32>
      %c0_59 = arith.constant 0 : index
      %c0_60 = arith.constant 0 : index
      %73 = vector.load %arg9[%c0_59, %c0_60] : memref<16x32xf32, #tpu.memory_space<vmem>>, vector<16x32xf32>
      %cst_61 = arith.constant dense<0.000000e+00> : vector<8x32xf32>
      %74 = tpu.matmul %72, %73, %cst_61 {dimension_numbers = #tpu.dot_dimension_numbers<[1], [0], [0], [1], [0, 0, 1, 1], [], []>} : vector<8x16xf32>, vector<16x32xf32>, vector<8x32xf32> -> vector<8x32xf32>
      %c0_62 = arith.constant 0 : index
      %c0_63 = arith.constant 0 : index
      %75 = vector.load %arg10[%c0_62, %c0_63] : memref<1x32xf32, #tpu.memory_space<vmem>>, vector<1x32xf32>
      %76 = vector.broadcast %75 : vector<1x32xf32> to vector<8x32xf32>
      %77 = arith.addf %74, %76 : vector<8x32xf32>
      %78 = vector.extract_strided_slice %70 {offsets = [0, 0], sizes = [8, 8], strides = [1, 1]} : vector<8x32xf32> to vector<8x8xf32>
      %c0_64 = arith.constant 0 : index
      %c0_65 = arith.constant 0 : index
      %c0_66 = arith.constant 0 : index
      %79 = vector.load %arg16[%c0_64, %c0_65, %c0_66] : memref<4x8x8xf32, #tpu.memory_space<vmem>>, vector<1x8x8xf32>
      %80 = vector.shape_cast %79 : vector<1x8x8xf32> to vector<8x8xf32>
      %81 = vector.shape_cast %78 : vector<8x8xf32> to vector<1x8x8xf32>
      tpu.vector_store %arg16[%c0_64, %c0_65, %c0_66], %81 {strides = array<i32>} : memref<4x8x8xf32, #tpu.memory_space<vmem>>, vector<1x8x8xf32>,
      %82 = vector.extract_strided_slice %77 {offsets = [0, 0], sizes = [8, 8], strides = [1, 1]} : vector<8x32xf32> to vector<8x8xf32>
      %c0_67 = arith.constant 0 : index
      %c0_68 = arith.constant 0 : index
      %c0_69 = arith.constant 0 : index
      %83 = vector.load %arg17[%c0_67, %c0_68, %c0_69] : memref<4x8x8xf32, #tpu.memory_space<vmem>>, vector<1x8x8xf32>
      %84 = vector.shape_cast %83 : vector<1x8x8xf32> to vector<8x8xf32>
      %85 = vector.shape_cast %82 : vector<8x8xf32> to vector<1x8x8xf32>
      tpu.vector_store %arg17[%c0_67, %c0_68, %c0_69], %85 {strides = array<i32>} : memref<4x8x8xf32, #tpu.memory_space<vmem>>, vector<1x8x8xf32>,
      %86 = vector.extract_strided_slice %70 {offsets = [0, 8], sizes = [8, 8], strides = [1, 1]} : vector<8x32xf32> to vector<8x8xf32>
      %c1_70 = arith.constant 1 : index
      %c0_71 = arith.constant 0 : index
      %c0_72 = arith.constant 0 : index
      %87 = vector.load %arg16[%c1_70, %c0_71, %c0_72] : memref<4x8x8xf32, #tpu.memory_space<vmem>>, vector<1x8x8xf32>
      %88 = vector.shape_cast %87 : vector<1x8x8xf32> to vector<8x8xf32>
      %89 = vector.shape_cast %86 : vector<8x8xf32> to vector<1x8x8xf32>
      tpu.vector_store %arg16[%c1_70, %c0_71, %c0_72], %89 {strides = array<i32>} : memref<4x8x8xf32, #tpu.memory_space<vmem>>, vector<1x8x8xf32>,
      %90 = vector.extract_strided_slice %77 {offsets = [0, 8], sizes = [8, 8], strides = [1, 1]} : vector<8x32xf32> to vector<8x8xf32>
      %c1_73 = arith.constant 1 : index
      %c0_74 = arith.constant 0 : index
      %c0_75 = arith.constant 0 : index
      %91 = vector.load %arg17[%c1_73, %c0_74, %c0_75] : memref<4x8x8xf32, #tpu.memory_space<vmem>>, vector<1x8x8xf32>
      %92 = vector.shape_cast %91 : vector<1x8x8xf32> to vector<8x8xf32>
      %93 = vector.shape_cast %90 : vector<8x8xf32> to vector<1x8x8xf32>
      tpu.vector_store %arg17[%c1_73, %c0_74, %c0_75], %93 {strides = array<i32>} : memref<4x8x8xf32, #tpu.memory_space<vmem>>, vector<1x8x8xf32>,
      %94 = vector.extract_strided_slice %70 {offsets = [0, 16], sizes = [8, 8], strides = [1, 1]} : vector<8x32xf32> to vector<8x8xf32>
      %c2_76 = arith.constant 2 : index
      %c0_77 = arith.constant 0 : index
      %c0_78 = arith.constant 0 : index
      %95 = vector.load %arg16[%c2_76, %c0_77, %c0_78] : memref<4x8x8xf32, #tpu.memory_space<vmem>>, vector<1x8x8xf32>
      %96 = vector.shape_cast %95 : vector<1x8x8xf32> to vector<8x8xf32>
      %97 = vector.shape_cast %94 : vector<8x8xf32> to vector<1x8x8xf32>
      tpu.vector_store %arg16[%c2_76, %c0_77, %c0_78], %97 {strides = array<i32>} : memref<4x8x8xf32, #tpu.memory_space<vmem>>, vector<1x8x8xf32>,
      %98 = vector.extract_strided_slice %77 {offsets = [0, 16], sizes = [8, 8], strides = [1, 1]} : vector<8x32xf32> to vector<8x8xf32>
      %c2_79 = arith.constant 2 : index
      %c0_80 = arith.constant 0 : index
      %c0_81 = arith.constant 0 : index
      %99 = vector.load %arg17[%c2_79, %c0_80, %c0_81] : memref<4x8x8xf32, #tpu.memory_space<vmem>>, vector<1x8x8xf32>
      %100 = vector.shape_cast %99 : vector<1x8x8xf32> to vector<8x8xf32>
      %101 = vector.shape_cast %98 : vector<8x8xf32> to vector<1x8x8xf32>
      tpu.vector_store %arg17[%c2_79, %c0_80, %c0_81], %101 {strides = array<i32>} : memref<4x8x8xf32, #tpu.memory_space<vmem>>, vector<1x8x8xf32>,
      %102 = vector.extract_strided_slice %70 {offsets = [0, 24], sizes = [8, 8], strides = [1, 1]} : vector<8x32xf32> to vector<8x8xf32>
      %c3_82 = arith.constant 3 : index
      %c0_83 = arith.constant 0 : index
      %c0_84 = arith.constant 0 : index
      %103 = vector.load %arg16[%c3_82, %c0_83, %c0_84] : memref<4x8x8xf32, #tpu.memory_space<vmem>>, vector<1x8x8xf32>
      %104 = vector.shape_cast %103 : vector<1x8x8xf32> to vector<8x8xf32>
      %105 = vector.shape_cast %102 : vector<8x8xf32> to vector<1x8x8xf32>
      tpu.vector_store %arg16[%c3_82, %c0_83, %c0_84], %105 {strides = array<i32>} : memref<4x8x8xf32, #tpu.memory_space<vmem>>, vector<1x8x8xf32>,
      %106 = vector.extract_strided_slice %77 {offsets = [0, 24], sizes = [8, 8], strides = [1, 1]} : vector<8x32xf32> to vector<8x8xf32>
      %c3_85 = arith.constant 3 : index
      %c0_86 = arith.constant 0 : index
      %c0_87 = arith.constant 0 : index
      %107 = vector.load %arg17[%c3_85, %c0_86, %c0_87] : memref<4x8x8xf32, #tpu.memory_space<vmem>>, vector<1x8x8xf32>
      %108 = vector.shape_cast %107 : vector<1x8x8xf32> to vector<8x8xf32>
      %109 = vector.shape_cast %106 : vector<8x8xf32> to vector<1x8x8xf32>
      tpu.vector_store %arg17[%c3_85, %c0_86, %c0_87], %109 {strides = array<i32>} : memref<4x8x8xf32, #tpu.memory_space<vmem>>, vector<1x8x8xf32>,
    } else {
    }
    %c0 = arith.constant 0 : index
    %c0_1 = arith.constant 0 : index
    %c0_2 = arith.constant 0 : index
    %3 = vector.load %arg2[%c0, %c0_1, %c0_2] : memref<1x8x16xf32, #tpu.memory_space<vmem>>, vector<1x8x16xf32>
    %4 = vector.shape_cast %3 : vector<1x8x16xf32> to vector<8x16xf32>
    %c0_3 = arith.constant 0 : index
    %c0_4 = arith.constant 0 : index
    %5 = vector.load %arg5[%c0_3, %c0_4] : memref<16x32xf32, #tpu.memory_space<vmem>>, vector<16x32xf32>
    %cst = arith.constant dense<0.000000e+00> : vector<8x32xf32>
    %6 = tpu.matmul %4, %5, %cst {dimension_numbers = #tpu.dot_dimension_numbers<[1], [0], [0], [1], [0, 0, 1, 1], [], []>} : vector<8x16xf32>, vector<16x32xf32>, vector<8x32xf32> -> vector<8x32xf32>
    %c0_5 = arith.constant 0 : index
    %c0_6 = arith.constant 0 : index
    %7 = vector.load %arg6[%c0_5, %c0_6] : memref<1x32xf32, #tpu.memory_space<vmem>>, vector<1x32xf32>
    %8 = vector.broadcast %7 : vector<1x32xf32> to vector<8x32xf32>
    %9 = arith.addf %6, %8 : vector<8x32xf32>
    %10 = vector.extract_strided_slice %9 {offsets = [0, 0], sizes = [8, 8], strides = [1, 1]} : vector<8x32xf32> to vector<8x8xf32>
    %c0_7 = arith.constant 0 : index
    %c0_8 = arith.constant 0 : index
    %c0_9 = arith.constant 0 : index
    %11 = vector.load %arg15[%c0_7, %c0_8, %c0_9] : memref<4x8x8xf32, #tpu.memory_space<vmem>>, vector<1x8x8xf32>
    %12 = vector.shape_cast %11 : vector<1x8x8xf32> to vector<8x8xf32>
    %13 = vector.shape_cast %10 : vector<8x8xf32> to vector<1x8x8xf32>
    tpu.vector_store %arg15[%c0_7, %c0_8, %c0_9], %13 {strides = array<i32>} : memref<4x8x8xf32, #tpu.memory_space<vmem>>, vector<1x8x8xf32>,
    %14 = vector.extract_strided_slice %9 {offsets = [0, 8], sizes = [8, 8], strides = [1, 1]} : vector<8x32xf32> to vector<8x8xf32>
    %c1 = arith.constant 1 : index
    %c0_10 = arith.constant 0 : index
    %c0_11 = arith.constant 0 : index
    %15 = vector.load %arg15[%c1, %c0_10, %c0_11] : memref<4x8x8xf32, #tpu.memory_space<vmem>>, vector<1x8x8xf32>
    %16 = vector.shape_cast %15 : vector<1x8x8xf32> to vector<8x8xf32>
    %17 = vector.shape_cast %14 : vector<8x8xf32> to vector<1x8x8xf32>
    tpu.vector_store %arg15[%c1, %c0_10, %c0_11], %17 {strides = array<i32>} : memref<4x8x8xf32, #tpu.memory_space<vmem>>, vector<1x8x8xf32>,
    %18 = vector.extract_strided_slice %9 {offsets = [0, 16], sizes = [8, 8], strides = [1, 1]} : vector<8x32xf32> to vector<8x8xf32>
    %c2 = arith.constant 2 : index
    %c0_12 = arith.constant 0 : index
    %c0_13 = arith.constant 0 : index
    %19 = vector.load %arg15[%c2, %c0_12, %c0_13] : memref<4x8x8xf32, #tpu.memory_space<vmem>>, vector<1x8x8xf32>
    %20 = vector.shape_cast %19 : vector<1x8x8xf32> to vector<8x8xf32>
    %21 = vector.shape_cast %18 : vector<8x8xf32> to vector<1x8x8xf32>
    tpu.vector_store %arg15[%c2, %c0_12, %c0_13], %21 {strides = array<i32>} : memref<4x8x8xf32, #tpu.memory_space<vmem>>, vector<1x8x8xf32>,
    %22 = vector.extract_strided_slice %9 {offsets = [0, 24], sizes = [8, 8], strides = [1, 1]} : vector<8x32xf32> to vector<8x8xf32>
    %c3 = arith.constant 3 : index
    %c0_14 = arith.constant 0 : index
    %c0_15 = arith.constant 0 : index
    %23 = vector.load %arg15[%c3, %c0_14, %c0_15] : memref<4x8x8xf32, #tpu.memory_space<vmem>>, vector<1x8x8xf32>
    %24 = vector.shape_cast %23 : vector<1x8x8xf32> to vector<8x8xf32>
    %25 = vector.shape_cast %22 : vector<8x8xf32> to vector<1x8x8xf32>
    tpu.vector_store %arg15[%c3, %c0_14, %c0_15], %25 {strides = array<i32>} : memref<4x8x8xf32, #tpu.memory_space<vmem>>, vector<1x8x8xf32>,
    %c0_16 = arith.constant 0 : index
    %c0_17 = arith.constant 0 : index
    %c0_18 = arith.constant 0 : index
    %26 = vector.load %arg15[%c0_16, %c0_17, %c0_18] : memref<4x8x8xf32, #tpu.memory_space<vmem>>, vector<4x8x8xf32>
    %c0_19 = arith.constant 0 : index
    %c0_20 = arith.constant 0 : index
    %c0_21 = arith.constant 0 : index
    %27 = vector.load %arg16[%c0_19, %c0_20, %c0_21] : memref<4x8x8xf32, #tpu.memory_space<vmem>>, vector<4x8x8xf32>
    "tpu.trace_start"() <{level = 10 : i32, message = "htd,hsd->hts"}> : () -> ()
    %cst_22 = arith.constant dense<0.000000e+00> : vector<4x8x8xf32>
    %28 = tpu.matmul %26, %27, %cst_22 {dimension_numbers = #tpu.dot_dimension_numbers<[2], [2], [1], [1], [0, 0, 0, 1, 1, 1], [0], [0]>} : vector<4x8x8xf32>, vector<4x8x8xf32>, vector<4x8x8xf32> -> vector<4x8x8xf32>
    "tpu.trace_stop"() : () -> ()
    %cst_23 = arith.constant dense<0xFF800000> : vector<4x8xf32>
    %29 = vector.multi_reduction <maximumf>, %28, %cst_23 [2] : vector<4x8x8xf32> to vector<4x8xf32>
    %30 = vector.shape_cast %29 : vector<4x8xf32> to vector<4x8x1xf32>
    %31 = vector.broadcast %30 : vector<4x8x1xf32> to vector<4x8x8xf32>
    %32 = arith.subf %28, %31 : vector<4x8x8xf32>
    %33 = math.exp %32 : vector<4x8x8xf32>
    %cst_24 = arith.constant dense<0.000000e+00> : vector<4x8xf32>
    %34 = vector.multi_reduction <add>, %33, %cst_24 [2] : vector<4x8x8xf32> to vector<4x8xf32>
    %35 = vector.shape_cast %34 : vector<4x8xf32> to vector<4x8x1xf32>
    %36 = vector.broadcast %35 : vector<4x8x1xf32> to vector<4x8x8xf32>
    %37 = arith.divf %33, %36 : vector<4x8x8xf32>
    %c0_25 = arith.constant 0 : index
    %c0_26 = arith.constant 0 : index
    %c0_27 = arith.constant 0 : index
    %c0_28 = arith.constant 0 : index
    %38 = vector.load %arg14[%c0_25, %c0_26, %c0_27, %c0_28] : memref<1x4x8x8xf32, #tpu.memory_space<vmem>>, vector<1x4x8x8xf32>
    %39 = vector.shape_cast %38 : vector<1x4x8x8xf32> to vector<4x8x8xf32>
    %40 = vector.shape_cast %37 : vector<4x8x8xf32> to vector<1x4x8x8xf32>
    tpu.vector_store %arg14[%c0_25, %c0_26, %c0_27, %c0_28], %40 {strides = array<i32>} : memref<1x4x8x8xf32, #tpu.memory_space<vmem>>, vector<1x4x8x8xf32>,
    %c0_29 = arith.constant 0 : index
    %c0_30 = arith.constant 0 : index
    %c0_31 = arith.constant 0 : index
    %41 = vector.load %arg17[%c0_29, %c0_30, %c0_31] : memref<4x8x8xf32, #tpu.memory_space<vmem>>, vector<4x8x8xf32>
    "tpu.trace_start"() <{level = 10 : i32, message = "hts,hsd->htd"}> : () -> ()
    %cst_32 = arith.constant dense<0.000000e+00> : vector<4x8x8xf32>
    %42 = tpu.matmul %37, %41, %cst_32 {dimension_numbers = #tpu.dot_dimension_numbers<[2], [1], [1], [2], [0, 0, 0, 1, 1, 2], [0], [0]>} : vector<4x8x8xf32>, vector<4x8x8xf32>, vector<4x8x8xf32> -> vector<4x8x8xf32>
    "tpu.trace_stop"() : () -> ()
    %43 = vector.extract_strided_slice %42 {offsets = [0, 0, 0], sizes = [1, 8, 8], strides = [1, 1, 1]} : vector<4x8x8xf32> to vector<1x8x8xf32>
    %44 = vector.shape_cast %43 : vector<1x8x8xf32> to vector<8x8xf32>
    %c0_33 = arith.constant 0 : index
    %c0_34 = arith.constant 0 : index
    %45 = vector.load %arg18[%c0_33, %c0_34] : memref<8x32xf32, #tpu.memory_space<vmem>>, vector<8x8xf32>
    tpu.vector_store %arg18[%c0_33, %c0_34], %44 {strides = array<i32>} : memref<8x32xf32, #tpu.memory_space<vmem>>, vector<8x8xf32>,
    %46 = vector.extract_strided_slice %42 {offsets = [1, 0, 0], sizes = [1, 8, 8], strides = [1, 1, 1]} : vector<4x8x8xf32> to vector<1x8x8xf32>
    %47 = vector.shape_cast %46 : vector<1x8x8xf32> to vector<8x8xf32>
    %c0_35 = arith.constant 0 : index
    %c8 = arith.constant 8 : index
    %48 = vector.load %arg18[%c0_35, %c8] : memref<8x32xf32, #tpu.memory_space<vmem>>, vector<8x8xf32>
    tpu.vector_store %arg18[%c0_35, %c8], %47 {strides = array<i32>} : memref<8x32xf32, #tpu.memory_space<vmem>>, vector<8x8xf32>,
    %49 = vector.extract_strided_slice %42 {offsets = [2, 0, 0], sizes = [1, 8, 8], strides = [1, 1, 1]} : vector<4x8x8xf32> to vector<1x8x8xf32>
    %50 = vector.shape_cast %49 : vector<1x8x8xf32> to vector<8x8xf32>
    %c0_36 = arith.constant 0 : index
    %c16 = arith.constant 16 : index
    %51 = vector.load %arg18[%c0_36, %c16] : memref<8x32xf32, #tpu.memory_space<vmem>>, vector<8x8xf32>
    tpu.vector_store %arg18[%c0_36, %c16], %50 {strides = array<i32>} : memref<8x32xf32, #tpu.memory_space<vmem>>, vector<8x8xf32>,
    %52 = vector.extract_strided_slice %42 {offsets = [3, 0, 0], sizes = [1, 8, 8], strides = [1, 1, 1]} : vector<4x8x8xf32> to vector<1x8x8xf32>
    %53 = vector.shape_cast %52 : vector<1x8x8xf32> to vector<8x8xf32>
    %c0_37 = arith.constant 0 : index
    %c24 = arith.constant 24 : index
    %54 = vector.load %arg18[%c0_37, %c24] : memref<8x32xf32, #tpu.memory_space<vmem>>, vector<8x8xf32>
    tpu.vector_store %arg18[%c0_37, %c24], %53 {strides = array<i32>} : memref<8x32xf32, #tpu.memory_space<vmem>>, vector<8x8xf32>,
    %c0_38 = arith.constant 0 : index
    %c0_39 = arith.constant 0 : index
    %55 = vector.load %arg18[%c0_38, %c0_39] : memref<8x32xf32, #tpu.memory_space<vmem>>, vector<8x32xf32>
    %c0_40 = arith.constant 0 : index
    %c0_41 = arith.constant 0 : index
    %56 = vector.load %arg11[%c0_40, %c0_41] : memref<32x32xf32, #tpu.memory_space<vmem>>, vector<32x32xf32>
    %cst_42 = arith.constant dense<0.000000e+00> : vector<8x32xf32>
    %57 = tpu.matmul %55, %56, %cst_42 {dimension_numbers = #tpu.dot_dimension_numbers<[1], [0], [0], [1], [0, 0, 1, 1], [], []>} : vector<8x32xf32>, vector<32x32xf32>, vector<8x32xf32> -> vector<8x32xf32>
    %c0_43 = arith.constant 0 : index
    %c0_44 = arith.constant 0 : index
    %58 = vector.load %arg12[%c0_43, %c0_44] : memref<1x32xf32, #tpu.memory_space<vmem>>, vector<1x32xf32>
    %59 = vector.broadcast %58 : vector<1x32xf32> to vector<8x32xf32>
    %60 = arith.addf %57, %59 : vector<8x32xf32>
    %c0_45 = arith.constant 0 : index
    %c0_46 = arith.constant 0 : index
    %c0_47 = arith.constant 0 : index
    %61 = vector.load %arg13[%c0_45, %c0_46, %c0_47] : memref<1x8x32xf32, #tpu.memory_space<vmem>>, vector<1x8x32xf32>
    %62 = vector.shape_cast %61 : vector<1x8x32xf32> to vector<8x32xf32>
    %63 = vector.shape_cast %60 : vector<8x32xf32> to vector<1x8x32xf32>
    tpu.vector_store %arg13[%c0_45, %c0_46, %c0_47], %63 {strides = array<i32>} : memref<1x8x32xf32, #tpu.memory_space<vmem>>, vector<1x8x32xf32>,
    return
  }
  func.func @transform_0(%arg0: i32, %arg1: i32) -> (i32, i32, i32) {
    %c0_i32 = arith.constant 0 : i32
    %c0_i32_0 = arith.constant 0 : i32
    return %arg0, %arg1, %c0_i32 : i32, i32, i32
  }
  func.func @transform_1(%arg0: i32, %arg1: i32) -> (i32, i32, i32) {
    %c0_i32 = arith.constant 0 : i32
    %c0_i32_0 = arith.constant 0 : i32
    %c0_i32_1 = arith.constant 0 : i32
    return %arg0, %c0_i32, %c0_i32_0 : i32, i32, i32
  }
  func.func @transform_2(%arg0: i32, %arg1: i32) -> (i32, i32, i32) {
    %c0_i32 = arith.constant 0 : i32
    %c0_i32_0 = arith.constant 0 : i32
    %c0_i32_1 = arith.constant 0 : i32
    return %arg0, %c0_i32, %c0_i32_0 : i32, i32, i32
  }
  func.func @transform_3(%arg0: i32, %arg1: i32) -> (i32, i32) {
    %c0_i32 = arith.constant 0 : i32
    %c0_i32_0 = arith.constant 0 : i32
    %c0_i32_1 = arith.constant 0 : i32
    return %c0_i32, %c0_i32_0 : i32, i32
  }
  func.func @transform_4(%arg0: i32, %arg1: i32) -> (i32, i32) {
    %c0_i32 = arith.constant 0 : i32
    %c0_i32_0 = arith.constant 0 : i32
    %c0_i32_1 = arith.constant 0 : i32
    return %c0_i32, %c0_i32_0 : i32, i32
  }
  func.func @transform_5(%arg0: i32, %arg1: i32) -> (i32, i32) {
    %c0_i32 = arith.constant 0 : i32
    %c0_i32_0 = arith.constant 0 : i32
    %c0_i32_1 = arith.constant 0 : i32
    return %c0_i32, %c0_i32_0 : i32, i32
  }
  func.func @transform_6(%arg0: i32, %arg1: i32) -> (i32, i32) {
    %c0_i32 = arith.constant 0 : i32
    %c0_i32_0 = arith.constant 0 : i32
    %c0_i32_1 = arith.constant 0 : i32
    return %c0_i32, %c0_i32_0 : i32, i32
  }
  func.func @transform_7(%arg0: i32, %arg1: i32) -> (i32, i32) {
    %c0_i32 = arith.constant 0 : i32
    %c0_i32_0 = arith.constant 0 : i32
    %c0_i32_1 = arith.constant 0 : i32
    return %c0_i32, %c0_i32_0 : i32, i32
  }
  func.func @transform_8(%arg0: i32, %arg1: i32) -> (i32, i32) {
    %c0_i32 = arith.constant 0 : i32
    %c0_i32_0 = arith.constant 0 : i32
    %c0_i32_1 = arith.constant 0 : i32
    return %c0_i32, %c0_i32_0 : i32, i32
  }
  func.func @transform_9(%arg0: i32, %arg1: i32) -> (i32, i32) {
    %c0_i32 = arith.constant 0 : i32
    %c0_i32_0 = arith.constant 0 : i32
    %c0_i32_1 = arith.constant 0 : i32
    return %c0_i32, %c0_i32_0 : i32, i32
  }
  func.func @transform_10(%arg0: i32, %arg1: i32) -> (i32, i32) {
    %c0_i32 = arith.constant 0 : i32
    %c0_i32_0 = arith.constant 0 : i32
    %c0_i32_1 = arith.constant 0 : i32
    return %c0_i32, %c0_i32_0 : i32, i32
  }
  func.func @transform_11(%arg0: i32, %arg1: i32) -> (i32, i32, i32) {
    %c0_i32 = arith.constant 0 : i32
    %c0_i32_0 = arith.constant 0 : i32
    return %arg0, %arg1, %c0_i32 : i32, i32, i32
  }
  func.func @transform_12(%arg0: i32, %arg1: i32) -> (i32, i32, i32, i32) {
    %c0_i32 = arith.constant 0 : i32
    %c0_i32_0 = arith.constant 0 : i32
    %c0_i32_1 = arith.constant 0 : i32
    return %arg0, %c0_i32, %arg1, %c0_i32_0 : i32, i32, i32, i32
  }
}

</mosaic_0001>

<llo_original>
// kernel: tpu_custom_call.1
$region0: #{tpu_custom_call.1}
  #allocation0 [shape = 'u32[]', space=smem, size = 0x4, offset = 0x4, fixed_abs, tag = 'smem constant byte address 0x4 - core index']
  #allocation1 [shape = 'u32[144,128]{1,0:T(1,128)}', space=vmem, size = 0x12000, scoped, tag = 'internal scratch']
  #allocation2 [shape = 'f32[4,8,8]{2,1,0:T(8,128)}', space=vmem, size = 0x4000, scoped, tag = 'scratch operand']
  #allocation3 [shape = 'f32[4,8,8]{2,1,0:T(8,128)}', space=vmem, size = 0x4000, scoped, tag = 'scratch operand']
  #allocation4 [shape = 'f32[4,8,8]{2,1,0:T(8,128)}', space=vmem, size = 0x4000, scoped, tag = 'scratch operand']
  #allocation5 [shape = 'f32[8,32]{1,0:T(8,128)}', space=vmem, size = 0x1000, scoped, tag = 'scratch operand']
  %s0 = inlined_call_operand.hbm [shape: f32[2,8,16], index: 0, kind: input, shape index: {}]
  %s1 = inlined_call_operand.hbm [shape: f32[2,8,16], index: 1, kind: input, shape index: {}]
  %s2 = inlined_call_operand.hbm [shape: f32[2,8,16], index: 2, kind: input, shape index: {}]
  %s3 = inlined_call_operand.hbm [shape: f32[16,32], index: 3, kind: input, shape index: {}]
  %s4 = inlined_call_operand.vmem [shape: f32[1,32], index: 4, kind: input, shape index: {}]
  %s5 = inlined_call_operand.hbm [shape: f32[16,32], index: 5, kind: input, shape index: {}]
  %s6 = inlined_call_operand.vmem [shape: f32[1,32], index: 6, kind: input, shape index: {}]
  %s7 = inlined_call_operand.hbm [shape: f32[16,32], index: 7, kind: input, shape index: {}]
  %s8 = inlined_call_operand.hbm [shape: f32[1,32], index: 8, kind: input, shape index: {}]
  %s9 = inlined_call_operand.vmem [shape: f32[32,32], index: 9, kind: input, shape index: {}]
  %s10 = inlined_call_operand.vmem [shape: f32[1,32], index: 10, kind: input, shape index: {}]
  %s11 = inlined_call_operand.hbm [shape: f32[2,8,32], index: 11, kind: output, shape index: {0}]
  %s12 = inlined_call_operand.hbm [shape: f32[2,4,8,8], index: 12, kind: output, shape index: {1}]
  %13 = xla_tuple %s11, %s12
  %s14 = sld [smem:[#allocation0]]
  $region117: #{tpu_custom_call.1} parent=0
    _
  %s16 = ssub.s32 1, %s14
  %s17 = scalar_select 0, %s16, %s14
  $region1: #{tpu_custom_call.1} parent=0
    #allocation6 [shape = 'u8[8192]{0}', space=vmem, size = 0x2000, scoped, tag = 'input window, operand 0']
    #allocation7 [shape = 's32[2]{0}', space=sflag, size = 0x8, scoped, tag = 'scoped memory for tpu_custom_call.1']
    #allocation8 [shape = 's32[2]{0}', space=sflag, size = 0x8, scoped, tag = 'scoped memory for tpu_custom_call.1']
    #allocation9 [shape = 'u8[8192]{0}', space=vmem, size = 0x2000, scoped, tag = 'input window, operand 1']
    #allocation10 [shape = 's32[2]{0}', space=sflag, size = 0x8, scoped, tag = 'scoped memory for tpu_custom_call.1']
    #allocation11 [shape = 'u8[8192]{0}', space=vmem, size = 0x2000, scoped, tag = 'input window, operand 2']
    #allocation12 [shape = 'u8[8192]{0}', space=vmem, size = 0x2000, scoped, tag = 'input window, operand 3, single buffered']
    #allocation13 [shape = 's32[1]{0}', space=sflag, size = 0x4, scoped, tag = 'scoped memory for tpu_custom_call.1']
    #allocation14 [shape = 'u8[8192]{0}', space=vmem, size = 0x2000, scoped, tag = 'input window, operand 5, single buffered']
    #allocation15 [shape = 'u8[8192]{0}', space=vmem, size = 0x2000, scoped, tag = 'input window, operand 7, single buffered']
    #allocation16 [shape = 's32[1]{0}', space=sflag, size = 0x4, scoped, tag = 'scoped memory for tpu_custom_call.1']
    #allocation17 [shape = 'u8[512]{0}', space=vmem, size = 0x400, scoped, tag = 'input window, operand 8, single buffered']
    #allocation18 [shape = 'u8[8192]{0}', space=vmem, size = 0x2000, scoped, tag = 'output window, operand 0']
    #allocation19 [shape = 'u8[32768]{0}', space=vmem, size = 0x8000, scoped, tag = 'output window, operand 1']
    #allocation20 [shape = 's32[2]{0}', space=sflag, size = 0x8, scoped, tag = 'scoped memory for tpu_custom_call.1']
    %18 = vsyncpa [#allocation7], 0
    %s19 = scalar_lea.sflag [#allocation7], 1
    %20 = vsyncpa %s19, 0
    %21 = vsyncpa [#allocation10], 0
    %s22 = scalar_lea.sflag [#allocation10], 1
    %23 = vsyncpa %s22, 0
    %24 = vsyncpa [#allocation13], 0
    %25 = vsyncpa [#allocation16], 0
    %26 = vsyncpa [#allocation8], 0
    %s27 = scalar_lea.sflag [#allocation8], 1
    %28 = vsyncpa %s27, 0
    %29 = vsyncpa [#allocation20], 0
    %s30 = scalar_lea.sflag [#allocation20], 1
    %31 = vsyncpa %s30, 0
    loop: start=0, step=1, limit=4
    $region2: #{tpu_custom_call.1} parent=1 // loop_pre_header
      _
    $region3: #{tpu_custom_call.1} parent=1 // loop_header
      %s33 = sphi 0, %s37
      %p34 = scmp.ge.s32.totalorder %s33, 4
      %s40 = sphi 0, %s52
      %s41 = sphi 0, %s48
      %s42 = sphi 0, %s40
      %s43 = sphi 0, %s41
      %s44 = sphi 0, %s42
      %s45 = sphi 0, %s43
      %s57 = sphi 0, %s59
      %s60 = sphi 0, %s57
      %s61 = sphi 0, %s60
      %s77 = sphi 0, %s61
      %s83 = sphi 0, %s85
      %s86 = sphi 0, %s83
      %s87 = sphi 0, %s86
      %s103 = sphi 0, %s87
      %s109 = sphi 0, %s111
      %s112 = sphi 0, %s109
      %s113 = sphi 0, %s112
      %s129 = sphi 0, %s113
      %s133 = sphi 0, %s133
      %s135 = sphi 0, %s133
      %s136 = sphi 0, %s135
      %s150 = sphi 0, %s136
      %s154 = sphi 0, %s154
      %s156 = sphi 0, %s154
      %s157 = sphi 0, %s156
      %s171 = sphi 0, %s157
      %s175 = sphi 0, %s175
      %s177 = sphi 0, %s175
      %s178 = sphi 0, %s177
      %s192 = sphi 0, %s178
      %s196 = sphi 0, %s196
      %s198 = sphi 0, %s196
      %s199 = sphi 0, %s198
      %s213 = sphi 0, %s199
      %s217 = sphi 0, %s217
      %s219 = sphi 0, %s217
      %s220 = sphi 0, %s219
      %s234 = sphi 0, %s220
      %s238 = sphi 0, %s238
      %s240 = sphi 0, %s238
      %s241 = sphi 0, %s240
      %s255 = sphi 0, %s241
      %s259 = sphi 0, %s259
      %s261 = sphi 0, %s259
      %s262 = sphi 0, %s261
      %s276 = sphi 0, %s262
      %s280 = sphi 0, %s280
      %s282 = sphi 0, %s280
      %s283 = sphi 0, %s282
      %s297 = sphi 0, %s283
      %s305 = sphi 0, %s307
      %s308 = sphi 0, %s305
      %s309 = sphi 0, %s308
      %s325 = sphi 0, %s309
      %s333 = sphi 0, %s335
      %s336 = sphi 0, %s333
      %s337 = sphi 0, %s336
      %s353 = sphi 0, %s337
    $region4: #{tpu_custom_call.1} parent=1 // loop_header_branch
      %36 = sbr.rel (%p34) target = $region8
    $region5: #{tpu_custom_call.1} parent=1 // loop_body
      %s38 = ssub.s32 %s33, 1
      %s39 = ssub.s32 %s33, 2
      %s46 = sadd.s32 1, %s41
      %p47 = scmp.ge.s32.totalorder %s46, 1
      %s48 = scalar_select %p47, 0, %s46
      %s49 = sadd.s32 1, %s40
      %s50 = scalar_select %p47, %s49, %s40
      %p51 = scmp.ge.s32.totalorder %s50, 2
      %s52 = scalar_select %p51, 0, %s50
      %s53 = ssub.s32 %s40, %s52
      %s54 = ssub.s32 %s41, %s48
      %s55 = sor.u32 %s53, %s54
      %p56 = scmp.eq.s32.totalorder %s55, 0
      %s58 = sadd.s32 %s57, 1
      %s59 = scalar_select %p56, %s57, %s58
      %p62 = pneg %p56
      %p63 = scmp.eq.s32.totalorder %s33, 1
      %p64 = por %p62, %p63
      %p65 = scmp.ne.s32.totalorder %s57, %s60
      %p66 = scmp.eq.s32.totalorder %s33, 0
      %p67 = por %p65, %p66
      %p68 = scmp.ne.s32.totalorder %s57, %s60
      %p69 = scmp.eq.s32.totalorder %s38, 1
      %p70 = por %p68, %p69
      %p71 = scmp.ne.s32.totalorder %s60, %s61
      %p72 = scmp.eq.s32.totalorder %s38, 0
      %p73 = por %p71, %p72
      %p74 = scmp.ne.s32.totalorder %s60, %s61
      %p75 = scmp.eq.s32.totalorder %s39, 1
      %p76 = por %p74, %p75
      %p78 = scmp.ne.s32.totalorder %s61, %s77
      %p79 = scmp.eq.s32.totalorder %s39, 0
      %p80 = por %p78, %p79
      %s81 = ssub.s32 %s40, %s52
      %p82 = scmp.eq.s32.totalorder %s81, 0
      %s84 = sadd.s32 %s83, 1
      %s85 = scalar_select %p82, %s83, %s84
      %p88 = pneg %p82
      %p89 = scmp.eq.s32.totalorder %s33, 1
      %p90 = por %p88, %p89
      %p91 = scmp.ne.s32.totalorder %s83, %s86
      %p92 = scmp.eq.s32.totalorder %s33, 0
      %p93 = por %p91, %p92
      %p94 = scmp.ne.s32.totalorder %s83, %s86
      %p95 = scmp.eq.s32.totalorder %s38, 1
      %p96 = por %p94, %p95
      %p97 = scmp.ne.s32.totalorder %s86, %s87
      %p98 = scmp.eq.s32.totalorder %s38, 0
      %p99 = por %p97, %p98
      %p100 = scmp.ne.s32.totalorder %s86, %s87
      %p101 = scmp.eq.s32.totalorder %s39, 1
      %p102 = por %p100, %p101
      %p104 = scmp.ne.s32.totalorder %s87, %s103
      %p105 = scmp.eq.s32.totalorder %s39, 0
      %p106 = por %p104, %p105
      %s107 = ssub.s32 %s40, %s52
      %p108 = scmp.eq.s32.totalorder %s107, 0
      %s110 = sadd.s32 %s109, 1
      %s111 = scalar_select %p108, %s109, %s110
      %p114 = pneg %p108
      %p115 = scmp.eq.s32.totalorder %s33, 1
      %p116 = por %p114, %p115
      %p117 = scmp.ne.s32.totalorder %s109, %s112
      %p118 = scmp.eq.s32.totalorder %s33, 0
      %p119 = por %p117, %p118
      %p120 = scmp.ne.s32.totalorder %s109, %s112
      %p121 = scmp.eq.s32.totalorder %s38, 1
      %p122 = por %p120, %p121
      %p123 = scmp.ne.s32.totalorder %s112, %s113
      %p124 = scmp.eq.s32.totalorder %s38, 0
      %p125 = por %p123, %p124
      %p126 = scmp.ne.s32.totalorder %s112, %s113
      %p127 = scmp.eq.s32.totalorder %s39, 1
      %p128 = por %p126, %p127
      %p130 = scmp.ne.s32.totalorder %s113, %s129
      %p131 = scmp.eq.s32.totalorder %s39, 0
      %p132 = por %p130, %p131
      %s134 = sadd.s32 %s133, 1
      %p137 = scmp.eq.s32.totalorder %s33, 1
      %p138 = scmp.ne.s32.totalorder %s133, %s135
      %p139 = scmp.eq.s32.totalorder %s33, 0
      %p140 = por %p138, %p139
      %p141 = scmp.ne.s32.totalorder %s133, %s135
      %p142 = scmp.eq.s32.totalorder %s38, 1
      %p143 = por %p141, %p142
      %p144 = scmp.ne.s32.totalorder %s135, %s136
      %p145 = scmp.eq.s32.totalorder %s38, 0
      %p146 = por %p144, %p145
      %p147 = scmp.ne.s32.totalorder %s135, %s136
      %p148 = scmp.eq.s32.totalorder %s39, 1
      %p149 = por %p147, %p148
      %p151 = scmp.ne.s32.totalorder %s136, %s150
      %p152 = scmp.eq.s32.totalorder %s39, 0
      %p153 = por %p151, %p152
      %s155 = sadd.s32 %s154, 1
      %p158 = scmp.eq.s32.totalorder %s33, 1
      %p159 = scmp.ne.s32.totalorder %s154, %s156
      %p160 = scmp.eq.s32.totalorder %s33, 0
      %p161 = por %p159, %p160
      %p162 = scmp.ne.s32.totalorder %s154, %s156
      %p163 = scmp.eq.s32.totalorder %s38, 1
      %p164 = por %p162, %p163
      %p165 = scmp.ne.s32.totalorder %s156, %s157
      %p166 = scmp.eq.s32.totalorder %s38, 0
      %p167 = por %p165, %p166
      %p168 = scmp.ne.s32.totalorder %s156, %s157
      %p169 = scmp.eq.s32.totalorder %s39, 1
      %p170 = por %p168, %p169
      %p172 = scmp.ne.s32.totalorder %s157, %s171
      %p173 = scmp.eq.s32.totalorder %s39, 0
      %p174 = por %p172, %p173
      %s176 = sadd.s32 %s175, 1
      %p179 = scmp.eq.s32.totalorder %s33, 1
      %p180 = scmp.ne.s32.totalorder %s175, %s177
      %p181 = scmp.eq.s32.totalorder %s33, 0
      %p182 = por %p180, %p181
      %p183 = scmp.ne.s32.totalorder %s175, %s177
      %p184 = scmp.eq.s32.totalorder %s38, 1
      %p185 = por %p183, %p184
      %p186 = scmp.ne.s32.totalorder %s177, %s178
      %p187 = scmp.eq.s32.totalorder %s38, 0
      %p188 = por %p186, %p187
      %p189 = scmp.ne.s32.totalorder %s177, %s178
      %p190 = scmp.eq.s32.totalorder %s39, 1
      %p191 = por %p189, %p190
      %p193 = scmp.ne.s32.totalorder %s178, %s192
      %p194 = scmp.eq.s32.totalorder %s39, 0
      %p195 = por %p193, %p194
      %s197 = sadd.s32 %s196, 1
      %p200 = scmp.eq.s32.totalorder %s33, 1
      %p201 = scmp.ne.s32.totalorder %s196, %s198
      %p202 = scmp.eq.s32.totalorder %s33, 0
      %p203 = por %p201, %p202
      %p204 = scmp.ne.s32.totalorder %s196, %s198
      %p205 = scmp.eq.s32.totalorder %s38, 1
      %p206 = por %p204, %p205
      %p207 = scmp.ne.s32.totalorder %s198, %s199
      %p208 = scmp.eq.s32.totalorder %s38, 0
      %p209 = por %p207, %p208
      %p210 = scmp.ne.s32.totalorder %s198, %s199
      %p211 = scmp.eq.s32.totalorder %s39, 1
      %p212 = por %p210, %p211
      %p214 = scmp.ne.s32.totalorder %s199, %s213
      %p215 = scmp.eq.s32.totalorder %s39, 0
      %p216 = por %p214, %p215
      %s218 = sadd.s32 %s217, 1
      %p221 = scmp.eq.s32.totalorder %s33, 1
      %p222 = scmp.ne.s32.totalorder %s217, %s219
      %p223 = scmp.eq.s32.totalorder %s33, 0
      %p224 = por %p222, %p223
      %p225 = scmp.ne.s32.totalorder %s217, %s219
      %p226 = scmp.eq.s32.totalorder %s38, 1
      %p227 = por %p225, %p226
      %p228 = scmp.ne.s32.totalorder %s219, %s220
      %p229 = scmp.eq.s32.totalorder %s38, 0
      %p230 = por %p228, %p229
      %p231 = scmp.ne.s32.totalorder %s219, %s220
      %p232 = scmp.eq.s32.totalorder %s39, 1
      %p233 = por %p231, %p232
      %p235 = scmp.ne.s32.totalorder %s220, %s234
      %p236 = scmp.eq.s32.totalorder %s39, 0
      %p237 = por %p235, %p236
      %s239 = sadd.s32 %s238, 1
      %p242 = scmp.eq.s32.totalorder %s33, 1
      %p243 = scmp.ne.s32.totalorder %s238, %s240
      %p244 = scmp.eq.s32.totalorder %s33, 0
      %p245 = por %p243, %p244
      %p246 = scmp.ne.s32.totalorder %s238, %s240
      %p247 = scmp.eq.s32.totalorder %s38, 1
      %p248 = por %p246, %p247
      %p249 = scmp.ne.s32.totalorder %s240, %s241
      %p250 = scmp.eq.s32.totalorder %s38, 0
      %p251 = por %p249, %p250
      %p252 = scmp.ne.s32.totalorder %s240, %s241
      %p253 = scmp.eq.s32.totalorder %s39, 1
      %p254 = por %p252, %p253
      %p256 = scmp.ne.s32.totalorder %s241, %s255
      %p257 = scmp.eq.s32.totalorder %s39, 0
      %p258 = por %p256, %p257
      %s260 = sadd.s32 %s259, 1
      %p263 = scmp.eq.s32.totalorder %s33, 1
      %p264 = scmp.ne.s32.totalorder %s259, %s261
      %p265 = scmp.eq.s32.totalorder %s33, 0
      %p266 = por %p264, %p265
      %p267 = scmp.ne.s32.totalorder %s259, %s261
      %p268 = scmp.eq.s32.totalorder %s38, 1
      %p269 = por %p267, %p268
      %p270 = scmp.ne.s32.totalorder %s261, %s262
      %p271 = scmp.eq.s32.totalorder %s38, 0
      %p272 = por %p270, %p271
      %p273 = scmp.ne.s32.totalorder %s261, %s262
      %p274 = scmp.eq.s32.totalorder %s39, 1
      %p275 = por %p273, %p274
      %p277 = scmp.ne.s32.totalorder %s262, %s276
      %p278 = scmp.eq.s32.totalorder %s39, 0
      %p279 = por %p277, %p278
      %s281 = sadd.s32 %s280, 1
      %p284 = scmp.eq.s32.totalorder %s33, 1
      %p285 = scmp.ne.s32.totalorder %s280, %s282
      %p286 = scmp.eq.s32.totalorder %s33, 0
      %p287 = por %p285, %p286
      %p288 = scmp.ne.s32.totalorder %s280, %s282
      %p289 = scmp.eq.s32.totalorder %s38, 1
      %p290 = por %p288, %p289
      %p291 = scmp.ne.s32.totalorder %s282, %s283
      %p292 = scmp.eq.s32.totalorder %s38, 0
      %p293 = por %p291, %p292
      %p294 = scmp.ne.s32.totalorder %s282, %s283
      %p295 = scmp.eq.s32.totalorder %s39, 1
      %p296 = por %p294, %p295
      %p298 = scmp.ne.s32.totalorder %s283, %s297
      %p299 = scmp.eq.s32.totalorder %s39, 0
      %p300 = por %p298, %p299
      %s301 = ssub.s32 %s40, %s52
      %s302 = ssub.s32 %s41, %s48
      %s303 = sor.u32 %s301, %s302
      %p304 = scmp.eq.s32.totalorder %s303, 0
      %s306 = sadd.s32 %s305, 1
      %s307 = scalar_select %p304, %s305, %s306
      %p310 = pneg %p304
      %p311 = scmp.eq.s32.totalorder %s33, 1
      %p312 = por %p310, %p311
      %p313 = scmp.ne.s32.totalorder %s305, %s308
      %p314 = scmp.eq.s32.totalorder %s33, 0
      %p315 = por %p313, %p314
      %p316 = scmp.ne.s32.totalorder %s305, %s308
      %p317 = scmp.eq.s32.totalorder %s38, 1
      %p318 = por %p316, %p317
      %p319 = scmp.ne.s32.totalorder %s308, %s309
      %p320 = scmp.eq.s32.totalorder %s38, 0
      %p321 = por %p319, %p320
      %p322 = scmp.ne.s32.totalorder %s308, %s309
      %p323 = scmp.eq.s32.totalorder %s39, 1
      %p324 = por %p322, %p323
      %p326 = scmp.ne.s32.totalorder %s309, %s325
      %p327 = scmp.eq.s32.totalorder %s39, 0
      %p328 = por %p326, %p327
      %s329 = ssub.s32 %s40, %s52
      %s330 = ssub.s32 %s41, %s48
      %s331 = sor.u32 %s329, %s330
      %p332 = scmp.eq.s32.totalorder %s331, 0
      %s334 = sadd.s32 %s333, 1
      %s335 = scalar_select %p332, %s333, %s334
      %p338 = pneg %p332
      %p339 = scmp.eq.s32.totalorder %s33, 1
      %p340 = por %p338, %p339
      %p341 = scmp.ne.s32.totalorder %s333, %s336
      %p342 = scmp.eq.s32.totalorder %s33, 0
      %p343 = por %p341, %p342
      %p344 = scmp.ne.s32.totalorder %s333, %s336
      %p345 = scmp.eq.s32.totalorder %s38, 1
      %p346 = por %p344, %p345
      %p347 = scmp.ne.s32.totalorder %s336, %s337
      %p348 = scmp.eq.s32.totalorder %s38, 0
      %p349 = por %p347, %p348
      %p350 = scmp.ne.s32.totalorder %s336, %s337
      %p351 = scmp.eq.s32.totalorder %s39, 1
      %p352 = por %p350, %p351
      %p354 = scmp.ne.s32.totalorder %s337, %s353
      %p355 = scmp.eq.s32.totalorder %s39, 0
      %p356 = por %p354, %p355
      %p357 = scmp.le.s32.totalorder 1, %s33
      %p358 = scmp.lt.s32.totalorder %s33, 3
      %p359 = pnand %p357, %p358
      %p360 = pneg %p359
      // Predicated region
      $region9: #{tpu_custom_call.1} parent=5 // pred_check
        _
      $region10: #{tpu_custom_call.1} parent=5 // pred_check_branch
        %362 = sbr.rel (%p359) target = $region12
      $region11: #{tpu_custom_call.1} parent=5 // pred_region
        %s363 = ssub.s32 %s33, 1
        // Predicated region
        $region13: #{tpu_custom_call.1} parent=11 // pred_check
          %p364 = pneg %p146
        $region14: #{tpu_custom_call.1} parent=11 // pred_check_branch
          %366 = sbr.rel (%p364) target = $region16
        $region15: #{tpu_custom_call.1} parent=11 // pred_region
          %s368 = ssub.s32 256, 256
          %369 = vsyncadd [#allocation13], %s368
          %s370 = sshll.u32 [#allocation12], 4
          %s371 = int_to_ptr.vmem [resolvable:$true] %s370
          %376 = dma.hbm_to_vmem [thread:$0]  %s3, 256, %s371, [#allocation13], 128, 128, 8
        $region16: #{tpu_custom_call.1} parent=11 // pred_fallthru
          _
        // Predicated region
        $region17: #{tpu_custom_call.1} parent=11 // pred_check
          %p377 = pneg %p167
        $region18: #{tpu_custom_call.1} parent=11 // pred_check_branch
          %379 = sbr.rel (%p377) target = $region20
        $region19: #{tpu_custom_call.1} parent=11 // pred_region
          _
        $region20: #{tpu_custom_call.1} parent=11 // pred_fallthru
          _
        // Predicated region
        $region21: #{tpu_custom_call.1} parent=11 // pred_check
          %p380 = pneg %p188
        $region22: #{tpu_custom_call.1} parent=11 // pred_check_branch
          %382 = sbr.rel (%p380) target = $region24
        $region23: #{tpu_custom_call.1} parent=11 // pred_region
          %s384 = ssub.s32 256, 256
          %385 = vsyncadd [#allocation13], %s384
          %s386 = sshll.u32 [#allocation14], 4
          %s387 = int_to_ptr.vmem [resolvable:$true] %s386
          %392 = dma.hbm_to_vmem [thread:$0]  %s5, 256, %s387, [#allocation13], 128, 128, 8
        $region24: #{tpu_custom_call.1} parent=11 // pred_fallthru
          _
        // Predicated region
        $region25: #{tpu_custom_call.1} parent=11 // pred_check
          %p393 = pneg %p209
        $region26: #{tpu_custom_call.1} parent=11 // pred_check_branch
          %395 = sbr.rel (%p393) target = $region28
        $region27: #{tpu_custom_call.1} parent=11 // pred_region
          _
        $region28: #{tpu_custom_call.1} parent=11 // pred_fallthru
          _
        // Predicated region
        $region29: #{tpu_custom_call.1} parent=11 // pred_check
          %p396 = pneg %p230
        $region30: #{tpu_custom_call.1} parent=11 // pred_check_branch
          %398 = sbr.rel (%p396) target = $region32
        $region31: #{tpu_custom_call.1} parent=11 // pred_region
          %s400 = ssub.s32 256, 256
          %401 = vsyncadd [#allocation16], %s400
          %s402 = sshll.u32 [#allocation15], 4
          %s403 = int_to_ptr.vmem [resolvable:$true] %s402
          %408 = dma.hbm_to_vmem [thread:$0]  %s7, 256, %s403, [#allocation16], 128, 128, 8
        $region32: #{tpu_custom_call.1} parent=11 // pred_fallthru
          _
        // Predicated region
        $region33: #{tpu_custom_call.1} parent=11 // pred_check
          %p409 = pneg %p251
        $region34: #{tpu_custom_call.1} parent=11 // pred_check_branch
          %411 = sbr.rel (%p409) target = $region36
        $region35: #{tpu_custom_call.1} parent=11 // pred_region
          %s413 = ssub.s32 16, 16
          %414 = vsyncadd [#allocation16], %s413
          %s416 = sshll.u32 [#allocation17], 4
          %s417 = int_to_ptr.vmem [resolvable:$true] %s416
          %419 = dma.hbm_to_vmem [thread:$0]  %s8, 16, %s417, [#allocation16]
        $region36: #{tpu_custom_call.1} parent=11 // pred_fallthru
          _
        // Predicated region
        $region37: #{tpu_custom_call.1} parent=11 // pred_check
          %p420 = pneg %p272
        $region38: #{tpu_custom_call.1} parent=11 // pred_check_branch
          %422 = sbr.rel (%p420) target = $region40
        $region39: #{tpu_custom_call.1} parent=11 // pred_region
          _
        $region40: #{tpu_custom_call.1} parent=11 // pred_fallthru
          _
        // Predicated region
        $region41: #{tpu_custom_call.1} parent=11 // pred_check
          %p423 = pneg %p293
        $region42: #{tpu_custom_call.1} parent=11 // pred_check_branch
          %425 = sbr.rel (%p423) target = $region44
        $region43: #{tpu_custom_call.1} parent=11 // pred_region
          _
        $region44: #{tpu_custom_call.1} parent=11 // pred_fallthru
          _
      $region12: #{tpu_custom_call.1} parent=5 // pred_fallthru
        _
      %p426 = scmp.lt.s32.totalorder %s33, 2
      // Predicated region
      $region45: #{tpu_custom_call.1} parent=5 // pred_check
        %p427 = pneg %p426
      $region46: #{tpu_custom_call.1} parent=5 // pred_check_branch
        %429 = sbr.rel (%p427) target = $region48
      $region47: #{tpu_custom_call.1} parent=5 // pred_region
        // Predicated region
        $region49: #{tpu_custom_call.1} parent=47 // pred_check
          %p430 = pneg %p67
        $region50: #{tpu_custom_call.1} parent=47 // pred_check_branch
          %432 = sbr.rel (%p430) target = $region52
        $region51: #{tpu_custom_call.1} parent=47 // pred_region
          %s433 = sand.u32 %s57, 1
          %s434 = scalar_lea.sflag [#allocation7], %s433
          %s435 = sand.u32 %s57, 1
          %s436 = smul.addr %s435, 8
          %s437 = scalar_lea.vmem [#allocation6], %s436
          %s439 = ssub.s32 128, 128
          %440 = vsyncadd %s434, %s439
          %s441 = sadd.s32 %s41, %s40
          %s442 = smul.addr %s441, 128
          %s443 = scalar_lea.hbm %s0, %s442
          %s445 = sshll.u32 %s437, 4
          %s446 = int_to_ptr.vmem [resolvable:$true] %s445
          %448 = dma.hbm_to_vmem [thread:$0]  %s443, 128, %s446, %s434
        $region52: #{tpu_custom_call.1} parent=47 // pred_fallthru
          _
        // Predicated region
        $region53: #{tpu_custom_call.1} parent=47 // pred_check
          %p449 = pneg %p93
        $region54: #{tpu_custom_call.1} parent=47 // pred_check_branch
          %451 = sbr.rel (%p449) target = $region56
        $region55: #{tpu_custom_call.1} parent=47 // pred_region
          %s452 = sand.u32 %s33, 1
          %s453 = scalar_lea.sflag [#allocation10], %s452
          %s454 = sand.u32 %s83, 1
          %s455 = smul.addr %s454, 8
          %s456 = scalar_lea.vmem [#allocation9], %s455
          %s458 = ssub.s32 128, 128
          %459 = vsyncadd %s453, %s458
          %s460 = smul.addr %s40, 128
          %s461 = scalar_lea.hbm %s1, %s460
          %s463 = sshll.u32 %s456, 4
          %s464 = int_to_ptr.vmem [resolvable:$true] %s463
          %466 = dma.hbm_to_vmem [thread:$0]  %s461, 128, %s464, %s453
        $region56: #{tpu_custom_call.1} parent=47 // pred_fallthru
          _
        // Predicated region
        $region57: #{tpu_custom_call.1} parent=47 // pred_check
          %p467 = pneg %p119
        $region58: #{tpu_custom_call.1} parent=47 // pred_check_branch
          %469 = sbr.rel (%p467) target = $region60
        $region59: #{tpu_custom_call.1} parent=47 // pred_region
          %s470 = sand.u32 %s33, 1
          %s471 = scalar_lea.sflag [#allocation10], %s470
          %s472 = sand.u32 %s109, 1
          %s473 = smul.addr %s472, 8
          %s474 = scalar_lea.vmem [#allocation11], %s473
          %s476 = ssub.s32 128, 128
          %477 = vsyncadd %s471, %s476
          %s478 = smul.addr %s40, 128
          %s479 = scalar_lea.hbm %s2, %s478
          %s481 = sshll.u32 %s474, 4
          %s482 = int_to_ptr.vmem [resolvable:$true] %s481
          %484 = dma.hbm_to_vmem [thread:$0]  %s479, 128, %s482, %s471
        $region60: #{tpu_custom_call.1} parent=47 // pred_fallthru
          _
      $region48: #{tpu_custom_call.1} parent=5 // pred_fallthru
        _
      %p485 = scmp.le.s32.totalorder 1, %s33
      %p486 = scmp.lt.s32.totalorder %s33, 3
      %p487 = pnand %p485, %p486
      %p488 = pneg %p487
      // Predicated region
      $region61: #{tpu_custom_call.1} parent=5 // pred_check
        _
      $region62: #{tpu_custom_call.1} parent=5 // pred_check_branch
        %490 = sbr.rel (%p487) target = $region64
      $region63: #{tpu_custom_call.1} parent=5 // pred_region
        %s491 = ssub.s32 %s33, 1
        %s492 = sand.u32 %s60, 1
        %s493 = scalar_lea.sflag [#allocation7], %s492
        %s494 = sand.u32 %s60, 1
        %s495 = smul.addr %s494, 8
        %s496 = scalar_lea.vmem [#allocation6], %s495
        // Predicated region
        $region65: #{tpu_custom_call.1} parent=63 // pred_check
          %p497 = pneg %p73
        $region66: #{tpu_custom_call.1} parent=63 // pred_check_branch
          %499 = sbr.rel (%p497) target = $region68
        $region67: #{tpu_custom_call.1} parent=63 // pred_region
          %500 = dma.done %s493, 128
        $region68: #{tpu_custom_call.1} parent=63 // pred_fallthru
          _
        %s501 = sand.u32 %s38, 1
        %s502 = scalar_lea.sflag [#allocation10], %s501
        %s503 = sand.u32 %s86, 1
        %s504 = smul.addr %s503, 8
        %s505 = scalar_lea.vmem [#allocation9], %s504
        // Predicated region
        $region69: #{tpu_custom_call.1} parent=63 // pred_check
          %p506 = pneg %p99
        $region70: #{tpu_custom_call.1} parent=63 // pred_check_branch
          %508 = sbr.rel (%p506) target = $region72
        $region71: #{tpu_custom_call.1} parent=63 // pred_region
          %509 = dma.done %s502, 128
        $region72: #{tpu_custom_call.1} parent=63 // pred_fallthru
          _
        %s510 = sand.u32 %s38, 1
        %s511 = scalar_lea.sflag [#allocation10], %s510
        %s512 = sand.u32 %s112, 1
        %s513 = smul.addr %s512, 8
        %s514 = scalar_lea.vmem [#allocation11], %s513
        // Predicated region
        $region73: #{tpu_custom_call.1} parent=63 // pred_check
          %p515 = pneg %p125
        $region74: #{tpu_custom_call.1} parent=63 // pred_check_branch
          %517 = sbr.rel (%p515) target = $region76
        $region75: #{tpu_custom_call.1} parent=63 // pred_region
          %518 = dma.done %s511, 128
        $region76: #{tpu_custom_call.1} parent=63 // pred_fallthru
          _
        // Predicated region
        $region77: #{tpu_custom_call.1} parent=63 // pred_check
          %p519 = pneg %p146
        $region78: #{tpu_custom_call.1} parent=63 // pred_check_branch
          %521 = sbr.rel (%p519) target = $region80
        $region79: #{tpu_custom_call.1} parent=63 // pred_region
          %522 = dma.done [#allocation13], 256
        $region80: #{tpu_custom_call.1} parent=63 // pred_fallthru
          _
        // Predicated region
        $region81: #{tpu_custom_call.1} parent=63 // pred_check
          %p523 = pneg %p188
        $region82: #{tpu_custom_call.1} parent=63 // pred_check_branch
          %525 = sbr.rel (%p523) target = $region84
        $region83: #{tpu_custom_call.1} parent=63 // pred_region
          %526 = dma.done [#allocation13], 256
        $region84: #{tpu_custom_call.1} parent=63 // pred_fallthru
          _
        // Predicated region
        $region85: #{tpu_custom_call.1} parent=63 // pred_check
          %p527 = pneg %p230
        $region86: #{tpu_custom_call.1} parent=63 // pred_check_branch
          %529 = sbr.rel (%p527) target = $region88
        $region87: #{tpu_custom_call.1} parent=63 // pred_region
          %530 = dma.done [#allocation16], 256
        $region88: #{tpu_custom_call.1} parent=63 // pred_fallthru
          _
        // Predicated region
        $region89: #{tpu_custom_call.1} parent=63 // pred_check
          %p531 = pneg %p251
        $region90: #{tpu_custom_call.1} parent=63 // pred_check_branch
          %533 = sbr.rel (%p531) target = $region92
        $region91: #{tpu_custom_call.1} parent=63 // pred_region
          %534 = dma.done [#allocation16], 16
        $region92: #{tpu_custom_call.1} parent=63 // pred_fallthru
          _
        %s535 = sand.u32 %s60, 1
        %s536 = scalar_lea.sflag [#allocation7], %s535
        %s537 = sand.u32 %s60, 1
        %s538 = smul.addr %s537, 8
        %s539 = scalar_lea.vmem [#allocation6], %s538
        %p540 = pneg %p73
        %p541 = pneg %p70
        %s542 = sand.u32 %s38, 1
        %s543 = scalar_lea.sflag [#allocation10], %s542
        %s544 = sand.u32 %s86, 1
        %s545 = smul.addr %s544, 8
        %s546 = scalar_lea.vmem [#allocation9], %s545
        %p547 = pneg %p99
        %p548 = pneg %p96
        %s549 = sand.u32 %s38, 1
        %s550 = scalar_lea.sflag [#allocation10], %s549
        %s551 = sand.u32 %s112, 1
        %s552 = smul.addr %s551, 8
        %s553 = scalar_lea.vmem [#allocation11], %s552
        %p554 = pneg %p125
        %p555 = pneg %p122
        %p556 = pneg %p146
        %p557 = pneg %p143
        %p558 = pneg %p167
        %p559 = pneg %p164
        %p560 = pneg %p188
        %p561 = pneg %p185
        %p562 = pneg %p209
        %p563 = pneg %p206
        %p564 = pneg %p230
        %p565 = pneg %p227
        %p566 = pneg %p251
        %p567 = pneg %p248
        %p568 = pneg %p272
        %p569 = pneg %p269
        %p570 = pneg %p293
        %p571 = pneg %p290
        %p572 = pneg %p321
        %p573 = pneg %p318
        %s574 = sand.u32 %s308, 1
        %s575 = scalar_lea.sflag [#allocation8], %s574
        %s576 = sand.u32 %s308, 1
        %s577 = smul.addr %s576, 8
        %s578 = scalar_lea.vmem [#allocation18], %s577
        %p579 = pneg %p349
        %p580 = pneg %p346
        %s581 = sand.u32 %s336, 1
        %s582 = scalar_lea.sflag [#allocation20], %s581
        %s583 = sand.u32 %s336, 1
        %s584 = smul.addr %s583, 32
        %s585 = scalar_lea.vmem [#allocation19], %s584
        %p586 = scmp.eq.s32.totalorder %s43, 0
        // Predicated region
        $region93: #{tpu_custom_call.1} parent=63 // pred_check
          %p587 = pneg %p586
        $region94: #{tpu_custom_call.1} parent=63 // pred_check_branch
          %589 = sbr.rel (%p587) target = $region96
        $region95: #{tpu_custom_call.1} parent=63 // pred_region
          %v590 = vld [vmem:[%s505] sm:$0xff]
          %v591 = vld [vmem:[#allocation14] sm:$0xff]
          %v592 = vld [vmem:[#allocation14 + $0x8] sm:$0xff]
          %v593 = vld [vmem:[%s6] sm:$0x1]
          %v595 = vlaneseq
          %v596 = vshrl.u32 %v595, 7
          %v597 = vsub.s32 0, %v596
          %v598 = vrot.slane %v593, %v597
          %vm600 = vcmask 130048
          %v602 = vsel %vm600, %v590, 0
          %604 = vmatprep.subr.mxu0 0.0
          %605 = vmatpush1.msra.mxu0 %v591
          %606 = vmatprep.subr.mxu0 0.0
          %607 = vmatpush1.msra.mxu0 %v592
          %608 = vmatprep.subr.mxu0 0.0
          %609 = vmatpush1.msra.mxu0 0.0
          %610 = vmatprep.subr.mxu0 0.0
          %611 = vmatpush1.msra.mxu0 0.0
          %612 = vmatprep.subr.mxu0 0.0
          %613 = vmatpush1.msra.mxu0 0.0
          %614 = vmatprep.subr.mxu0 0.0
          %615 = vmatpush1.msra.mxu0 0.0
          %616 = vmatprep.subr.mxu0 0.0
          %617 = vmatpush1.msra.mxu0 0.0
          %618 = vmatprep.subr.mxu0 0.0
          %619 = vmatpush1.msra.mxu0 0.0
          %620 = vmatprep.subr.mxu0 0.0
          %621 = vmatpush1.msra.mxu0 0.0
          %622 = vmatprep.subr.mxu0 0.0
          %623 = vmatpush1.msra.mxu0 0.0
          %624 = vmatprep.subr.mxu0 0.0
          %625 = vmatpush1.msra.mxu0 0.0
          %626 = vmatprep.subr.mxu0 0.0
          %627 = vmatpush1.msra.mxu0 0.0
          %628 = vmatprep.subr.mxu0 0.0
          %629 = vmatpush1.msra.mxu0 0.0
          %630 = vmatprep.subr.mxu0 0.0
          %631 = vmatpush1.msra.mxu0 0.0
          %632 = vmatprep.subr.mxu0 0.0
          %633 = vmatpush1.msra.mxu0 0.0
          %634 = vmatprep.subr.mxu0 0.0
          %635 = vmatpush1.msra.mxu0 0.0
          %636 = vmatprep.subr.mxu0 0.0
          %637 = vmatpush1.msra.mxu0 0.0
          %638 = vmatprep.subr.mxu0 0.0
          %639 = vmatpush1.msra.mxu0 0.0
          %640 = vmatprep.subr.mxu0 0.0
          %641 = vmatpush1.msra.mxu0 0.0
          %642 = vmatprep.subr.mxu0 0.0
          %643 = vmatpush1.msra.mxu0 0.0
          %644 = vmatprep.subr.mxu0 0.0
          %645 = vmatpush1.msra.mxu0 0.0
          %646 = vmatprep.subr.mxu0 0.0
          %647 = vmatpush1.msra.mxu0 0.0
          %648 = vmatprep.subr.mxu0 0.0
          %649 = vmatpush1.msra.mxu0 0.0
          %650 = vmatprep.subr.mxu0 0.0
          %651 = vmatpush1.msra.mxu0 0.0
          %652 = vmatprep.subr.mxu0 0.0
          %653 = vmatpush1.msra.mxu0 0.0
          %654 = vmatprep.subr.mxu0 0.0
          %655 = vmatpush1.msra.mxu0 0.0
          %656 = vmatprep.subr.mxu0 0.0
          %657 = vmatpush1.msra.mxu0 0.0
          %658 = vmatprep.subr.mxu0 0.0
          %659 = vmatpush1.msra.mxu0 0.0
          %660 = vmatprep.subr.mxu0 0.0
          %661 = vmatpush1.msra.mxu0 0.0
          %662 = vmatprep.subr.mxu0 0.0
          %663 = vmatpush1.msra.mxu0 0.0
          %664 = vmatprep.subr.mxu0 0.0
          %665 = vmatpush1.msra.mxu0 0.0
          %666 = vmatprep.subr.mxu0 0.0
          %667 = vmatpush1.msra.mxu0 0.0
          %668 = vmatprep.mubr.f32.mxu0 0.0
          %669 = vmatmul.mubr.f32.gmra.mrb[0].mxu0 %v602
          %v670 = vpop.f32.mrb[0].mxu0
          %v671 = vadd.f32 %v598, %v670
          %v672 = vpop.f32.mrb[0].mxu0
          %673 = vdwg.mxu0
          %v674 = vld [vmem:[%s514] sm:$0xff]
          %v675 = vld [vmem:[#allocation15] sm:$0xff]
          %v676 = vld [vmem:[#allocation15 + $0x8] sm:$0xff]
          %v677 = vld [vmem:[#allocation17] sm:$0x1]
          %v679 = vlaneseq
          %v680 = vshrl.u32 %v679, 7
          %v681 = vsub.s32 0, %v680
          %v682 = vrot.slane %v677, %v681
          %v685 = vsel %vm600, %v674, 0
          %687 = vmatprep.subr.mxu0 0.0
          %688 = vmatpush1.msra.mxu0 %v675
          %689 = vmatprep.subr.mxu0 0.0
          %690 = vmatpush1.msra.mxu0 %v676
          %691 = vmatprep.subr.mxu0 0.0
          %692 = vmatpush1.msra.mxu0 0.0
          %693 = vmatprep.subr.mxu0 0.0
          %694 = vmatpush1.msra.mxu0 0.0
          %695 = vmatprep.subr.mxu0 0.0
          %696 = vmatpush1.msra.mxu0 0.0
          %697 = vmatprep.subr.mxu0 0.0
          %698 = vmatpush1.msra.mxu0 0.0
          %699 = vmatprep.subr.mxu0 0.0
          %700 = vmatpush1.msra.mxu0 0.0
          %701 = vmatprep.subr.mxu0 0.0
          %702 = vmatpush1.msra.mxu0 0.0
          %703 = vmatprep.subr.mxu0 0.0
          %704 = vmatpush1.msra.mxu0 0.0
          %705 = vmatprep.subr.mxu0 0.0
          %706 = vmatpush1.msra.mxu0 0.0
          %707 = vmatprep.subr.mxu0 0.0
          %708 = vmatpush1.msra.mxu0 0.0
          %709 = vmatprep.subr.mxu0 0.0
          %710 = vmatpush1.msra.mxu0 0.0
          %711 = vmatprep.subr.mxu0 0.0
          %712 = vmatpush1.msra.mxu0 0.0
          %713 = vmatprep.subr.mxu0 0.0
          %714 = vmatpush1.msra.mxu0 0.0
          %715 = vmatprep.subr.mxu0 0.0
          %716 = vmatpush1.msra.mxu0 0.0
          %717 = vmatprep.subr.mxu0 0.0
          %718 = vmatpush1.msra.mxu0 0.0
          %719 = vmatprep.subr.mxu0 0.0
          %720 = vmatpush1.msra.mxu0 0.0
          %721 = vmatprep.subr.mxu0 0.0
          %722 = vmatpush1.msra.mxu0 0.0
          %723 = vmatprep.subr.mxu0 0.0
          %724 = vmatpush1.msra.mxu0 0.0
          %725 = vmatprep.subr.mxu0 0.0
          %726 = vmatpush1.msra.mxu0 0.0
          %727 = vmatprep.subr.mxu0 0.0
          %728 = vmatpush1.msra.mxu0 0.0
          %729 = vmatprep.subr.mxu0 0.0
          %730 = vmatpush1.msra.mxu0 0.0
          %731 = vmatprep.subr.mxu0 0.0
          %732 = vmatpush1.msra.mxu0 0.0
          %733 = vmatprep.subr.mxu0 0.0
          %734 = vmatpush1.msra.mxu0 0.0
          %735 = vmatprep.subr.mxu0 0.0
          %736 = vmatpush1.msra.mxu0 0.0
          %737 = vmatprep.subr.mxu0 0.0
          %738 = vmatpush1.msra.mxu0 0.0
          %739 = vmatprep.subr.mxu0 0.0
          %740 = vmatpush1.msra.mxu0 0.0
          %741 = vmatprep.subr.mxu0 0.0
          %742 = vmatpush1.msra.mxu0 0.0
          %743 = vmatprep.subr.mxu0 0.0
          %744 = vmatpush1.msra.mxu0 0.0
          %745 = vmatprep.subr.mxu0 0.0
          %746 = vmatpush1.msra.mxu0 0.0
          %747 = vmatprep.subr.mxu0 0.0
          %748 = vmatpush1.msra.mxu0 0.0
          %749 = vmatprep.subr.mxu0 0.0
          %750 = vmatpush1.msra.mxu0 0.0
          %751 = vmatprep.mubr.f32.mxu0 0.0
          %752 = vmatmul.mubr.f32.gmra.mrb[0].mxu0 %v685
          %v753 = vpop.f32.mrb[0].mxu0
          %v754 = vadd.f32 %v682, %v753
          %v755 = vpop.f32.mrb[0].mxu0
          %756 = vdwg.mxu0
          %vm757 = vcmask 64512
          %758 = vst.msk [vmem:[#allocation3] sm:$0xff] %vm757, %v671
          %759 = vst.msk [vmem:[#allocation4] sm:$0xff] %vm757, %v754
          %761 = vrot.lane.b32.xlu0 %v671, 120
          %v762 = vpop.permute.xlu0 %761
          %s764 = scalar_lea.vmem [#allocation3], 8
          %765 = vst.msk [vmem:[%s764] sm:$0xff] %vm757, %v762
          %767 = vrot.lane.b32.xlu0 %v754, 120
          %v768 = vpop.permute.xlu0 %767
          %s770 = scalar_lea.vmem [#allocation4], 8
          %771 = vst.msk [vmem:[%s770] sm:$0xff] %vm757, %v768
          %772 = vrot.lane.b32.xlu0 %v671, 112
          %v773 = vpop.permute.xlu0 %772
          %s775 = scalar_lea.vmem [#allocation3], 16
          %776 = vst.msk [vmem:[%s775] sm:$0xff] %vm757, %v773
          %777 = vrot.lane.b32.xlu0 %v754, 112
          %v778 = vpop.permute.xlu0 %777
          %s780 = scalar_lea.vmem [#allocation4], 16
          %781 = vst.msk [vmem:[%s780] sm:$0xff] %vm757, %v778
          %782 = vrot.lane.b32.xlu0 %v671, 104
          %v783 = vpop.permute.xlu0 %782
          %s785 = scalar_lea.vmem [#allocation3], 24
          %786 = vst.msk [vmem:[%s785] sm:$0xff] %vm757, %v783
          %787 = vrot.lane.b32.xlu0 %v754, 104
          %v788 = vpop.permute.xlu0 %787
          %s790 = scalar_lea.vmem [#allocation4], 24
          %791 = vst.msk [vmem:[%s790] sm:$0xff] %vm757, %v788
        $region96: #{tpu_custom_call.1} parent=63 // pred_fallthru
          _
        %v792 = vld [vmem:[%s496] sm:$0xff]
        %v793 = vld [vmem:[#allocation12] sm:$0xff]
        %v794 = vld [vmem:[#allocation12 + $0x8] sm:$0xff]
        %v795 = vld [vmem:[%s4] sm:$0x1]
        %v797 = vlaneseq
        %v798 = vshrl.u32 %v797, 7
        %v799 = vsub.s32 0, %v798
        %v800 = vrot.slane %v795, %v799
        %vm802 = vcmask 130048
        %v804 = vsel %vm802, %v792, 0
        %806 = vmatprep.subr.mxu0 0.0
        %807 = vmatpush1.msra.mxu0 %v793
        %808 = vmatprep.subr.mxu0 0.0
        %809 = vmatpush1.msra.mxu0 %v794
        %810 = vmatprep.subr.mxu0 0.0
        %811 = vmatpush1.msra.mxu0 0.0
        %812 = vmatprep.subr.mxu0 0.0
        %813 = vmatpush1.msra.mxu0 0.0
        %814 = vmatprep.subr.mxu0 0.0
        %815 = vmatpush1.msra.mxu0 0.0
        %816 = vmatprep.subr.mxu0 0.0
        %817 = vmatpush1.msra.mxu0 0.0
        %818 = vmatprep.subr.mxu0 0.0
        %819 = vmatpush1.msra.mxu0 0.0
        %820 = vmatprep.subr.mxu0 0.0
        %821 = vmatpush1.msra.mxu0 0.0
        %822 = vmatprep.subr.mxu0 0.0
        %823 = vmatpush1.msra.mxu0 0.0
        %824 = vmatprep.subr.mxu0 0.0
        %825 = vmatpush1.msra.mxu0 0.0
        %826 = vmatprep.subr.mxu0 0.0
        %827 = vmatpush1.msra.mxu0 0.0
        %828 = vmatprep.subr.mxu0 0.0
        %829 = vmatpush1.msra.mxu0 0.0
        %830 = vmatprep.subr.mxu0 0.0
        %831 = vmatpush1.msra.mxu0 0.0
        %832 = vmatprep.subr.mxu0 0.0
        %833 = vmatpush1.msra.mxu0 0.0
        %834 = vmatprep.subr.mxu0 0.0
        %835 = vmatpush1.msra.mxu0 0.0
        %836 = vmatprep.subr.mxu0 0.0
        %837 = vmatpush1.msra.mxu0 0.0
        %838 = vmatprep.subr.mxu0 0.0
        %839 = vmatpush1.msra.mxu0 0.0
        %840 = vmatprep.subr.mxu0 0.0
        %841 = vmatpush1.msra.mxu0 0.0
        %842 = vmatprep.subr.mxu0 0.0
        %843 = vmatpush1.msra.mxu0 0.0
        %844 = vmatprep.subr.mxu0 0.0
        %845 = vmatpush1.msra.mxu0 0.0
        %846 = vmatprep.subr.mxu0 0.0
        %847 = vmatpush1.msra.mxu0 0.0
        %848 = vmatprep.subr.mxu0 0.0
        %849 = vmatpush1.msra.mxu0 0.0
        %850 = vmatprep.subr.mxu0 0.0
        %851 = vmatpush1.msra.mxu0 0.0
        %852 = vmatprep.subr.mxu0 0.0
        %853 = vmatpush1.msra.mxu0 0.0
        %854 = vmatprep.subr.mxu0 0.0
        %855 = vmatpush1.msra.mxu0 0.0
        %856 = vmatprep.subr.mxu0 0.0
        %857 = vmatpush1.msra.mxu0 0.0
        %858 = vmatprep.subr.mxu0 0.0
        %859 = vmatpush1.msra.mxu0 0.0
        %860 = vmatprep.subr.mxu0 0.0
        %861 = vmatpush1.msra.mxu0 0.0
        %862 = vmatprep.subr.mxu0 0.0
        %863 = vmatpush1.msra.mxu0 0.0
        %864 = vmatprep.subr.mxu0 0.0
        %865 = vmatpush1.msra.mxu0 0.0
        %866 = vmatprep.subr.mxu0 0.0
        %867 = vmatpush1.msra.mxu0 0.0
        %868 = vmatprep.subr.mxu0 0.0
        %869 = vmatpush1.msra.mxu0 0.0
        %870 = vmatprep.mubr.f32.mxu0 0.0
        %871 = vmatmul.mubr.f32.gmra.mrb[0].mxu0 %v804
        %v872 = vpop.f32.mrb[0].mxu0
        %v873 = vadd.f32 %v800, %v872
        %v874 = vpop.f32.mrb[0].mxu0
        %875 = vdwg.mxu0
        %vm876 = vcmask 64512
        %877 = vst.msk [vmem:[#allocation2] sm:$0xff] %vm876, %v873
        %879 = vrot.lane.b32.xlu0 %v873, 120
        %v880 = vpop.permute.xlu0 %879
        %s882 = scalar_lea.vmem [#allocation2], 8
        %883 = vst.msk [vmem:[%s882] sm:$0xff] %vm876, %v880
        %884 = vrot.lane.b32.xlu0 %v873, 112
        %v885 = vpop.permute.xlu0 %884
        %s887 = scalar_lea.vmem [#allocation2], 16
        %888 = vst.msk [vmem:[%s887] sm:$0xff] %vm876, %v885
        %889 = vrot.lane.b32.xlu0 %v873, 104
        %v890 = vpop.permute.xlu0 %889
        %s892 = scalar_lea.vmem [#allocation2], 24
        %893 = vst.msk [vmem:[%s892] sm:$0xff] %vm876, %v890
        %v894 = vld [vmem:[#allocation2] sm:$0xff]
        %v895 = vld [vmem:[#allocation2 + $0x8] sm:$0xff]
        %v896 = vld [vmem:[#allocation2 + $0x10] sm:$0xff]
        %v897 = vld [vmem:[#allocation2 + $0x18] sm:$0xff]
        %v898 = vld [vmem:[#allocation3] sm:$0xff]
        %v899 = vld [vmem:[#allocation3 + $0x8] sm:$0xff]
        %v900 = vld [vmem:[#allocation3 + $0x10] sm:$0xff]
        %v901 = vld [vmem:[#allocation3 + $0x18] sm:$0xff]
        %v903 = vsel %vm876, %v894, 0
        %v906 = vsel %vm876, %v898, 0
        %908 = vmatprep.subr.mxu0 0.0
        %909 = vmatpush1.xpose.msra.mxu0 %v906
        %910 = vmatprep.subr.mxu0 0.0
        %911 = vmatpush1.xpose.msra.mxu0 0.0
        %912 = vmatprep.subr.mxu0 0.0
        %913 = vmatpush1.xpose.msra.mxu0 0.0
        %914 = vmatprep.subr.mxu0 0.0
        %915 = vmatpush1.xpose.msra.mxu0 0.0
        %916 = vmatprep.subr.mxu0 0.0
        %917 = vmatpush1.xpose.msra.mxu0 0.0
        %918 = vmatprep.subr.mxu0 0.0
        %919 = vmatpush1.xpose.msra.mxu0 0.0
        %920 = vmatprep.subr.mxu0 0.0
        %921 = vmatpush1.xpose.msra.mxu0 0.0
        %922 = vmatprep.subr.mxu0 0.0
        %923 = vmatpush1.xpose.msra.mxu0 0.0
        %924 = vmatprep.subr.mxu0 0.0
        %925 = vmatpush1.xpose.msra.mxu0 0.0
        %926 = vmatprep.subr.mxu0 0.0
        %927 = vmatpush1.xpose.msra.mxu0 0.0
        %928 = vmatprep.subr.mxu0 0.0
        %929 = vmatpush1.xpose.msra.mxu0 0.0
        %930 = vmatprep.subr.mxu0 0.0
        %931 = vmatpush1.xpose.msra.mxu0 0.0
        %932 = vmatprep.subr.mxu0 0.0
        %933 = vmatpush1.xpose.msra.mxu0 0.0
        %934 = vmatprep.subr.mxu0 0.0
        %935 = vmatpush1.xpose.msra.mxu0 0.0
        %936 = vmatprep.subr.mxu0 0.0
        %937 = vmatpush1.xpose.msra.mxu0 0.0
        %938 = vmatprep.subr.mxu0 0.0
        %939 = vmatpush1.xpose.msra.mxu0 0.0
        %940 = vmatprep.subr.mxu0 0.0
        %941 = vmatpush1.xpose.msra.mxu0 0.0
        %942 = vmatprep.subr.mxu0 0.0
        %943 = vmatpush1.xpose.msra.mxu0 0.0
        %944 = vmatprep.subr.mxu0 0.0
        %945 = vmatpush1.xpose.msra.mxu0 0.0
        %946 = vmatprep.subr.mxu0 0.0
        %947 = vmatpush1.xpose.msra.mxu0 0.0
        %948 = vmatprep.subr.mxu0 0.0
        %949 = vmatpush1.xpose.msra.mxu0 0.0
        %950 = vmatprep.subr.mxu0 0.0
        %951 = vmatpush1.xpose.msra.mxu0 0.0
        %952 = vmatprep.subr.mxu0 0.0
        %953 = vmatpush1.xpose.msra.mxu0 0.0
        %954 = vmatprep.subr.mxu0 0.0
        %955 = vmatpush1.xpose.msra.mxu0 0.0
        %956 = vmatprep.subr.mxu0 0.0
        %957 = vmatpush1.xpose.msra.mxu0 0.0
        %958 = vmatprep.subr.mxu0 0.0
        %959 = vmatpush1.xpose.msra.mxu0 0.0
        %960 = vmatprep.subr.mxu0 0.0
        %961 = vmatpush1.xpose.msra.mxu0 0.0
        %962 = vmatprep.subr.mxu0 0.0
        %963 = vmatpush1.xpose.msra.mxu0 0.0
        %964 = vmatprep.subr.mxu0 0.0
        %965 = vmatpush1.xpose.msra.mxu0 0.0
        %966 = vmatprep.subr.mxu0 0.0
        %967 = vmatpush1.xpose.msra.mxu0 0.0
        %968 = vmatprep.subr.mxu0 0.0
        %969 = vmatpush1.xpose.msra.mxu0 0.0
        %970 = vmatprep.subr.mxu0 0.0
        %971 = vmatpush1.xpose.msra.mxu0 0.0
        %972 = vmatprep.mubr.f32.mxu0 0.0
        %973 = vmatmul.mubr.f32.gmra.mrb[0].mxu0 %v903
        %v974 = vpop.f32.mrb[0].mxu0
        %v975 = vadd.f32 0.0, %v974
        %v976 = vpop.f32.mrb[0].mxu0
        %977 = vdwg.mxu0
        %v979 = vsel %vm876, %v895, 0
        %v982 = vsel %vm876, %v899, 0
        %984 = vmatprep.subr.mxu0 0.0
        %985 = vmatpush1.xpose.msra.mxu0 %v982
        %986 = vmatprep.subr.mxu0 0.0
        %987 = vmatpush1.xpose.msra.mxu0 0.0
        %988 = vmatprep.subr.mxu0 0.0
        %989 = vmatpush1.xpose.msra.mxu0 0.0
        %990 = vmatprep.subr.mxu0 0.0
        %991 = vmatpush1.xpose.msra.mxu0 0.0
        %992 = vmatprep.subr.mxu0 0.0
        %993 = vmatpush1.xpose.msra.mxu0 0.0
        %994 = vmatprep.subr.mxu0 0.0
        %995 = vmatpush1.xpose.msra.mxu0 0.0
        %996 = vmatprep.subr.mxu0 0.0
        %997 = vmatpush1.xpose.msra.mxu0 0.0
        %998 = vmatprep.subr.mxu0 0.0
        %999 = vmatpush1.xpose.msra.mxu0 0.0
        %1000 = vmatprep.subr.mxu0 0.0
        %1001 = vmatpush1.xpose.msra.mxu0 0.0
        %1002 = vmatprep.subr.mxu0 0.0
        %1003 = vmatpush1.xpose.msra.mxu0 0.0
        %1004 = vmatprep.subr.mxu0 0.0
        %1005 = vmatpush1.xpose.msra.mxu0 0.0
        %1006 = vmatprep.subr.mxu0 0.0
        %1007 = vmatpush1.xpose.msra.mxu0 0.0
        %1008 = vmatprep.subr.mxu0 0.0
        %1009 = vmatpush1.xpose.msra.mxu0 0.0
        %1010 = vmatprep.subr.mxu0 0.0
        %1011 = vmatpush1.xpose.msra.mxu0 0.0
        %1012 = vmatprep.subr.mxu0 0.0
        %1013 = vmatpush1.xpose.msra.mxu0 0.0
        %1014 = vmatprep.subr.mxu0 0.0
        %1015 = vmatpush1.xpose.msra.mxu0 0.0
        %1016 = vmatprep.subr.mxu0 0.0
        %1017 = vmatpush1.xpose.msra.mxu0 0.0
        %1018 = vmatprep.subr.mxu0 0.0
        %1019 = vmatpush1.xpose.msra.mxu0 0.0
        %1020 = vmatprep.subr.mxu0 0.0
        %1021 = vmatpush1.xpose.msra.mxu0 0.0
        %1022 = vmatprep.subr.mxu0 0.0
        %1023 = vmatpush1.xpose.msra.mxu0 0.0
        %1024 = vmatprep.subr.mxu0 0.0
        %1025 = vmatpush1.xpose.msra.mxu0 0.0
        %1026 = vmatprep.subr.mxu0 0.0
        %1027 = vmatpush1.xpose.msra.mxu0 0.0
        %1028 = vmatprep.subr.mxu0 0.0
        %1029 = vmatpush1.xpose.msra.mxu0 0.0
        %1030 = vmatprep.subr.mxu0 0.0
        %1031 = vmatpush1.xpose.msra.mxu0 0.0
        %1032 = vmatprep.subr.mxu0 0.0
        %1033 = vmatpush1.xpose.msra.mxu0 0.0
        %1034 = vmatprep.subr.mxu0 0.0
        %1035 = vmatpush1.xpose.msra.mxu0 0.0
        %1036 = vmatprep.subr.mxu0 0.0
        %1037 = vmatpush1.xpose.msra.mxu0 0.0
        %1038 = vmatprep.subr.mxu0 0.0
        %1039 = vmatpush1.xpose.msra.mxu0 0.0
        %1040 = vmatprep.subr.mxu0 0.0
        %1041 = vmatpush1.xpose.msra.mxu0 0.0
        %1042 = vmatprep.subr.mxu0 0.0
        %1043 = vmatpush1.xpose.msra.mxu0 0.0
        %1044 = vmatprep.subr.mxu0 0.0
        %1045 = vmatpush1.xpose.msra.mxu0 0.0
        %1046 = vmatprep.subr.mxu0 0.0
        %1047 = vmatpush1.xpose.msra.mxu0 0.0
        %1048 = vmatprep.mubr.f32.mxu0 0.0
        %1049 = vmatmul.mubr.f32.gmra.mrb[0].mxu0 %v979
        %v1050 = vpop.f32.mrb[0].mxu0
        %v1051 = vadd.f32 0.0, %v1050
        %v1052 = vpop.f32.mrb[0].mxu0
        %1053 = vdwg.mxu0
        %v1055 = vsel %vm876, %v896, 0
        %v1058 = vsel %vm876, %v900, 0
        %1060 = vmatprep.subr.mxu0 0.0
        %1061 = vmatpush1.xpose.msra.mxu0 %v1058
        %1062 = vmatprep.subr.mxu0 0.0
        %1063 = vmatpush1.xpose.msra.mxu0 0.0
        %1064 = vmatprep.subr.mxu0 0.0
        %1065 = vmatpush1.xpose.msra.mxu0 0.0
        %1066 = vmatprep.subr.mxu0 0.0
        %1067 = vmatpush1.xpose.msra.mxu0 0.0
        %1068 = vmatprep.subr.mxu0 0.0
        %1069 = vmatpush1.xpose.msra.mxu0 0.0
        %1070 = vmatprep.subr.mxu0 0.0
        %1071 = vmatpush1.xpose.msra.mxu0 0.0
        %1072 = vmatprep.subr.mxu0 0.0
        %1073 = vmatpush1.xpose.msra.mxu0 0.0
        %1074 = vmatprep.subr.mxu0 0.0
        %1075 = vmatpush1.xpose.msra.mxu0 0.0
        %1076 = vmatprep.subr.mxu0 0.0
        %1077 = vmatpush1.xpose.msra.mxu0 0.0
        %1078 = vmatprep.subr.mxu0 0.0
        %1079 = vmatpush1.xpose.msra.mxu0 0.0
        %1080 = vmatprep.subr.mxu0 0.0
        %1081 = vmatpush1.xpose.msra.mxu0 0.0
        %1082 = vmatprep.subr.mxu0 0.0
        %1083 = vmatpush1.xpose.msra.mxu0 0.0
        %1084 = vmatprep.subr.mxu0 0.0
        %1085 = vmatpush1.xpose.msra.mxu0 0.0
        %1086 = vmatprep.subr.mxu0 0.0
        %1087 = vmatpush1.xpose.msra.mxu0 0.0
        %1088 = vmatprep.subr.mxu0 0.0
        %1089 = vmatpush1.xpose.msra.mxu0 0.0
        %1090 = vmatprep.subr.mxu0 0.0
        %1091 = vmatpush1.xpose.msra.mxu0 0.0
        %1092 = vmatprep.subr.mxu0 0.0
        %1093 = vmatpush1.xpose.msra.mxu0 0.0
        %1094 = vmatprep.subr.mxu0 0.0
        %1095 = vmatpush1.xpose.msra.mxu0 0.0
        %1096 = vmatprep.subr.mxu0 0.0
        %1097 = vmatpush1.xpose.msra.mxu0 0.0
        %1098 = vmatprep.subr.mxu0 0.0
        %1099 = vmatpush1.xpose.msra.mxu0 0.0
        %1100 = vmatprep.subr.mxu0 0.0
        %1101 = vmatpush1.xpose.msra.mxu0 0.0
        %1102 = vmatprep.subr.mxu0 0.0
        %1103 = vmatpush1.xpose.msra.mxu0 0.0
        %1104 = vmatprep.subr.mxu0 0.0
        %1105 = vmatpush1.xpose.msra.mxu0 0.0
        %1106 = vmatprep.subr.mxu0 0.0
        %1107 = vmatpush1.xpose.msra.mxu0 0.0
        %1108 = vmatprep.subr.mxu0 0.0
        %1109 = vmatpush1.xpose.msra.mxu0 0.0
        %1110 = vmatprep.subr.mxu0 0.0
        %1111 = vmatpush1.xpose.msra.mxu0 0.0
        %1112 = vmatprep.subr.mxu0 0.0
        %1113 = vmatpush1.xpose.msra.mxu0 0.0
        %1114 = vmatprep.subr.mxu0 0.0
        %1115 = vmatpush1.xpose.msra.mxu0 0.0
        %1116 = vmatprep.subr.mxu0 0.0
        %1117 = vmatpush1.xpose.msra.mxu0 0.0
        %1118 = vmatprep.subr.mxu0 0.0
        %1119 = vmatpush1.xpose.msra.mxu0 0.0
        %1120 = vmatprep.subr.mxu0 0.0
        %1121 = vmatpush1.xpose.msra.mxu0 0.0
        %1122 = vmatprep.subr.mxu0 0.0
        %1123 = vmatpush1.xpose.msra.mxu0 0.0
        %1124 = vmatprep.mubr.f32.mxu0 0.0
        %1125 = vmatmul.mubr.f32.gmra.mrb[0].mxu0 %v1055
        %v1126 = vpop.f32.mrb[0].mxu0
        %v1127 = vadd.f32 0.0, %v1126
        %v1128 = vpop.f32.mrb[0].mxu0
        %1129 = vdwg.mxu0
        %v1131 = vsel %vm876, %v897, 0
        %v1134 = vsel %vm876, %v901, 0
        %1136 = vmatprep.subr.mxu0 0.0
        %1137 = vmatpush1.xpose.msra.mxu0 %v1134
        %1138 = vmatprep.subr.mxu0 0.0
        %1139 = vmatpush1.xpose.msra.mxu0 0.0
        %1140 = vmatprep.subr.mxu0 0.0
        %1141 = vmatpush1.xpose.msra.mxu0 0.0
        %1142 = vmatprep.subr.mxu0 0.0
        %1143 = vmatpush1.xpose.msra.mxu0 0.0
        %1144 = vmatprep.subr.mxu0 0.0
        %1145 = vmatpush1.xpose.msra.mxu0 0.0
        %1146 = vmatprep.subr.mxu0 0.0
        %1147 = vmatpush1.xpose.msra.mxu0 0.0
        %1148 = vmatprep.subr.mxu0 0.0
        %1149 = vmatpush1.xpose.msra.mxu0 0.0
        %1150 = vmatprep.subr.mxu0 0.0
        %1151 = vmatpush1.xpose.msra.mxu0 0.0
        %1152 = vmatprep.subr.mxu0 0.0
        %1153 = vmatpush1.xpose.msra.mxu0 0.0
        %1154 = vmatprep.subr.mxu0 0.0
        %1155 = vmatpush1.xpose.msra.mxu0 0.0
        %1156 = vmatprep.subr.mxu0 0.0
        %1157 = vmatpush1.xpose.msra.mxu0 0.0
        %1158 = vmatprep.subr.mxu0 0.0
        %1159 = vmatpush1.xpose.msra.mxu0 0.0
        %1160 = vmatprep.subr.mxu0 0.0
        %1161 = vmatpush1.xpose.msra.mxu0 0.0
        %1162 = vmatprep.subr.mxu0 0.0
        %1163 = vmatpush1.xpose.msra.mxu0 0.0
        %1164 = vmatprep.subr.mxu0 0.0
        %1165 = vmatpush1.xpose.msra.mxu0 0.0
        %1166 = vmatprep.subr.mxu0 0.0
        %1167 = vmatpush1.xpose.msra.mxu0 0.0
        %1168 = vmatprep.subr.mxu0 0.0
        %1169 = vmatpush1.xpose.msra.mxu0 0.0
        %1170 = vmatprep.subr.mxu0 0.0
        %1171 = vmatpush1.xpose.msra.mxu0 0.0
        %1172 = vmatprep.subr.mxu0 0.0
        %1173 = vmatpush1.xpose.msra.mxu0 0.0
        %1174 = vmatprep.subr.mxu0 0.0
        %1175 = vmatpush1.xpose.msra.mxu0 0.0
        %1176 = vmatprep.subr.mxu0 0.0
        %1177 = vmatpush1.xpose.msra.mxu0 0.0
        %1178 = vmatprep.subr.mxu0 0.0
        %1179 = vmatpush1.xpose.msra.mxu0 0.0
        %1180 = vmatprep.subr.mxu0 0.0
        %1181 = vmatpush1.xpose.msra.mxu0 0.0
        %1182 = vmatprep.subr.mxu0 0.0
        %1183 = vmatpush1.xpose.msra.mxu0 0.0
        %1184 = vmatprep.subr.mxu0 0.0
        %1185 = vmatpush1.xpose.msra.mxu0 0.0
        %1186 = vmatprep.subr.mxu0 0.0
        %1187 = vmatpush1.xpose.msra.mxu0 0.0
        %1188 = vmatprep.subr.mxu0 0.0
        %1189 = vmatpush1.xpose.msra.mxu0 0.0
        %1190 = vmatprep.subr.mxu0 0.0
        %1191 = vmatpush1.xpose.msra.mxu0 0.0
        %1192 = vmatprep.subr.mxu0 0.0
        %1193 = vmatpush1.xpose.msra.mxu0 0.0
        %1194 = vmatprep.subr.mxu0 0.0
        %1195 = vmatpush1.xpose.msra.mxu0 0.0
        %1196 = vmatprep.subr.mxu0 0.0
        %1197 = vmatpush1.xpose.msra.mxu0 0.0
        %1198 = vmatprep.subr.mxu0 0.0
        %1199 = vmatpush1.xpose.msra.mxu0 0.0
        %1200 = vmatprep.mubr.f32.mxu0 0.0
        %1201 = vmatmul.mubr.f32.gmra.mrb[0].mxu0 %v1131
        %v1202 = vpop.f32.mrb[0].mxu0
        %v1203 = vadd.f32 0.0, %v1202
        %v1204 = vpop.f32.mrb[0].mxu0
        %1205 = vdwg.mxu0
        %v1206 = vsel %vm876, %v975, -inf
        %1207 = vmax.xlane.f32.xlu0 %v1206
        %v1208 = vpop.xlane.xlu0 %1207
        %v1209 = vsel %vm876, %v1051, -inf
        %1210 = vmax.xlane.f32.xlu0 %v1209
        %v1211 = vpop.xlane.xlu0 %1210
        %v1212 = vsel %vm876, %v1127, -inf
        %1213 = vmax.xlane.f32.xlu0 %v1212
        %v1214 = vpop.xlane.xlu0 %1213
        %v1215 = vsel %vm876, %v1203, -inf
        %1216 = vmax.xlane.f32.xlu0 %v1215
        %v1217 = vpop.xlane.xlu0 %1216
        %v1218 = vsub.f32 %v975, %v1208
        %v1219 = vsub.f32 %v1051, %v1211
        %v1220 = vsub.f32 %v1127, %v1214
        %v1221 = vsub.f32 %v1203, %v1217
        %v1222 = vmul.f32 %v1218, 1.442695
        %v1223 = vpow.pop %v1222
        %v1224 = vmul.f32 %v1219, 1.442695
        %v1225 = vpow.pop %v1224
        %v1226 = vmul.f32 %v1220, 1.442695
        %v1227 = vpow.pop %v1226
        %v1228 = vmul.f32 %v1221, 1.442695
        %v1229 = vpow.pop %v1228
        %v1230 = vsel %vm876, %v1223, 0.0
        %1231 = vadd.xlane.f32.xlu0 %v1230
        %v1232 = vpop.xlane.xlu0 %1231
        %v1233 = vsel %vm876, %v1225, 0.0
        %1234 = vadd.xlane.f32.xlu0 %v1233
        %v1235 = vpop.xlane.xlu0 %1234
        %v1236 = vsel %vm876, %v1227, 0.0
        %1237 = vadd.xlane.f32.xlu0 %v1236
        %v1238 = vpop.xlane.xlu0 %1237
        %v1239 = vsel %vm876, %v1229, 0.0
        %1240 = vadd.xlane.f32.xlu0 %v1239
        %v1241 = vpop.xlane.xlu0 %1240
        %v1242 = vrcp.pop %v1232
        %v1243 = vmul.f32 %v1223, %v1242
        %v1244 = vrcp.pop %v1235
        %v1245 = vmul.f32 %v1225, %v1244
        %v1246 = vrcp.pop %v1238
        %v1247 = vmul.f32 %v1227, %v1246
        %v1248 = vrcp.pop %v1241
        %v1249 = vmul.f32 %v1229, %v1248
        %1250 = vst.msk [vmem:[%s585] sm:$0xff] %vm876, %v1243
        %1251 = vst.msk [vmem:[%s585 + $0x8] sm:$0xff] %vm876, %v1245
        %1252 = vst.msk [vmem:[%s585 + $0x10] sm:$0xff] %vm876, %v1247
        %1253 = vst.msk [vmem:[%s585 + $0x18] sm:$0xff] %vm876, %v1249
        %v1254 = vld [vmem:[#allocation4] sm:$0xff]
        %v1255 = vld [vmem:[#allocation4 + $0x8] sm:$0xff]
        %v1256 = vld [vmem:[#allocation4 + $0x10] sm:$0xff]
        %v1257 = vld [vmem:[#allocation4 + $0x18] sm:$0xff]
        %v1259 = vsel %vm876, %v1243, 0
        %1261 = vmatprep.subr.mxu0 0.0
        %1262 = vmatpush1.msra.mxu0 %v1254
        %1263 = vmatprep.subr.mxu0 0.0
        %1264 = vmatpush1.msra.mxu0 0.0
        %1265 = vmatprep.subr.mxu0 0.0
        %1266 = vmatpush1.msra.mxu0 0.0
        %1267 = vmatprep.subr.mxu0 0.0
        %1268 = vmatpush1.msra.mxu0 0.0
        %1269 = vmatprep.subr.mxu0 0.0
        %1270 = vmatpush1.msra.mxu0 0.0
        %1271 = vmatprep.subr.mxu0 0.0
        %1272 = vmatpush1.msra.mxu0 0.0
        %1273 = vmatprep.subr.mxu0 0.0
        %1274 = vmatpush1.msra.mxu0 0.0
        %1275 = vmatprep.subr.mxu0 0.0
        %1276 = vmatpush1.msra.mxu0 0.0
        %1277 = vmatprep.subr.mxu0 0.0
        %1278 = vmatpush1.msra.mxu0 0.0
        %1279 = vmatprep.subr.mxu0 0.0
        %1280 = vmatpush1.msra.mxu0 0.0
        %1281 = vmatprep.subr.mxu0 0.0
        %1282 = vmatpush1.msra.mxu0 0.0
        %1283 = vmatprep.subr.mxu0 0.0
        %1284 = vmatpush1.msra.mxu0 0.0
        %1285 = vmatprep.subr.mxu0 0.0
        %1286 = vmatpush1.msra.mxu0 0.0
        %1287 = vmatprep.subr.mxu0 0.0
        %1288 = vmatpush1.msra.mxu0 0.0
        %1289 = vmatprep.subr.mxu0 0.0
        %1290 = vmatpush1.msra.mxu0 0.0
        %1291 = vmatprep.subr.mxu0 0.0
        %1292 = vmatpush1.msra.mxu0 0.0
        %1293 = vmatprep.subr.mxu0 0.0
        %1294 = vmatpush1.msra.mxu0 0.0
        %1295 = vmatprep.subr.mxu0 0.0
        %1296 = vmatpush1.msra.mxu0 0.0
        %1297 = vmatprep.subr.mxu0 0.0
        %1298 = vmatpush1.msra.mxu0 0.0
        %1299 = vmatprep.subr.mxu0 0.0
        %1300 = vmatpush1.msra.mxu0 0.0
        %1301 = vmatprep.subr.mxu0 0.0
        %1302 = vmatpush1.msra.mxu0 0.0
        %1303 = vmatprep.subr.mxu0 0.0
        %1304 = vmatpush1.msra.mxu0 0.0
        %1305 = vmatprep.subr.mxu0 0.0
        %1306 = vmatpush1.msra.mxu0 0.0
        %1307 = vmatprep.subr.mxu0 0.0
        %1308 = vmatpush1.msra.mxu0 0.0
        %1309 = vmatprep.subr.mxu0 0.0
        %1310 = vmatpush1.msra.mxu0 0.0
        %1311 = vmatprep.subr.mxu0 0.0
        %1312 = vmatpush1.msra.mxu0 0.0
        %1313 = vmatprep.subr.mxu0 0.0
        %1314 = vmatpush1.msra.mxu0 0.0
        %1315 = vmatprep.subr.mxu0 0.0
        %1316 = vmatpush1.msra.mxu0 0.0
        %1317 = vmatprep.subr.mxu0 0.0
        %1318 = vmatpush1.msra.mxu0 0.0
        %1319 = vmatprep.subr.mxu0 0.0
        %1320 = vmatpush1.msra.mxu0 0.0
        %1321 = vmatprep.subr.mxu0 0.0
        %1322 = vmatpush1.msra.mxu0 0.0
        %1323 = vmatprep.subr.mxu0 0.0
        %1324 = vmatpush1.msra.mxu0 0.0
        %1325 = vmatprep.mubr.f32.mxu0 0.0
        %1326 = vmatmul.mubr.f32.gmra.mrb[0].mxu0 %v1259
        %v1327 = vpop.f32.mrb[0].mxu0
        %v1328 = vadd.f32 0.0, %v1327
        %v1329 = vpop.f32.mrb[0].mxu0
        %1330 = vdwg.mxu0
        %v1332 = vsel %vm876, %v1245, 0
        %1334 = vmatprep.subr.mxu0 0.0
        %1335 = vmatpush1.msra.mxu0 %v1255
        %1336 = vmatprep.subr.mxu0 0.0
        %1337 = vmatpush1.msra.mxu0 0.0
        %1338 = vmatprep.subr.mxu0 0.0
        %1339 = vmatpush1.msra.mxu0 0.0
        %1340 = vmatprep.subr.mxu0 0.0
        %1341 = vmatpush1.msra.mxu0 0.0
        %1342 = vmatprep.subr.mxu0 0.0
        %1343 = vmatpush1.msra.mxu0 0.0
        %1344 = vmatprep.subr.mxu0 0.0
        %1345 = vmatpush1.msra.mxu0 0.0
        %1346 = vmatprep.subr.mxu0 0.0
        %1347 = vmatpush1.msra.mxu0 0.0
        %1348 = vmatprep.subr.mxu0 0.0
        %1349 = vmatpush1.msra.mxu0 0.0
        %1350 = vmatprep.subr.mxu0 0.0
        %1351 = vmatpush1.msra.mxu0 0.0
        %1352 = vmatprep.subr.mxu0 0.0
        %1353 = vmatpush1.msra.mxu0 0.0
        %1354 = vmatprep.subr.mxu0 0.0
        %1355 = vmatpush1.msra.mxu0 0.0
        %1356 = vmatprep.subr.mxu0 0.0
        %1357 = vmatpush1.msra.mxu0 0.0
        %1358 = vmatprep.subr.mxu0 0.0
        %1359 = vmatpush1.msra.mxu0 0.0
        %1360 = vmatprep.subr.mxu0 0.0
        %1361 = vmatpush1.msra.mxu0 0.0
        %1362 = vmatprep.subr.mxu0 0.0
        %1363 = vmatpush1.msra.mxu0 0.0
        %1364 = vmatprep.subr.mxu0 0.0
        %1365 = vmatpush1.msra.mxu0 0.0
        %1366 = vmatprep.subr.mxu0 0.0
        %1367 = vmatpush1.msra.mxu0 0.0
        %1368 = vmatprep.subr.mxu0 0.0
        %1369 = vmatpush1.msra.mxu0 0.0
        %1370 = vmatprep.subr.mxu0 0.0
        %1371 = vmatpush1.msra.mxu0 0.0
        %1372 = vmatprep.subr.mxu0 0.0
        %1373 = vmatpush1.msra.mxu0 0.0
        %1374 = vmatprep.subr.mxu0 0.0
        %1375 = vmatpush1.msra.mxu0 0.0
        %1376 = vmatprep.subr.mxu0 0.0
        %1377 = vmatpush1.msra.mxu0 0.0
        %1378 = vmatprep.subr.mxu0 0.0
        %1379 = vmatpush1.msra.mxu0 0.0
        %1380 = vmatprep.subr.mxu0 0.0
        %1381 = vmatpush1.msra.mxu0 0.0
        %1382 = vmatprep.subr.mxu0 0.0
        %1383 = vmatpush1.msra.mxu0 0.0
        %1384 = vmatprep.subr.mxu0 0.0
        %1385 = vmatpush1.msra.mxu0 0.0
        %1386 = vmatprep.subr.mxu0 0.0
        %1387 = vmatpush1.msra.mxu0 0.0
        %1388 = vmatprep.subr.mxu0 0.0
        %1389 = vmatpush1.msra.mxu0 0.0
        %1390 = vmatprep.subr.mxu0 0.0
        %1391 = vmatpush1.msra.mxu0 0.0
        %1392 = vmatprep.subr.mxu0 0.0
        %1393 = vmatpush1.msra.mxu0 0.0
        %1394 = vmatprep.subr.mxu0 0.0
        %1395 = vmatpush1.msra.mxu0 0.0
        %1396 = vmatprep.subr.mxu0 0.0
        %1397 = vmatpush1.msra.mxu0 0.0
        %1398 = vmatprep.mubr.f32.mxu0 0.0
        %1399 = vmatmul.mubr.f32.gmra.mrb[0].mxu0 %v1332
        %v1400 = vpop.f32.mrb[0].mxu0
        %v1401 = vadd.f32 0.0, %v1400
        %v1402 = vpop.f32.mrb[0].mxu0
        %1403 = vdwg.mxu0
        %v1405 = vsel %vm876, %v1247, 0
        %1407 = vmatprep.subr.mxu0 0.0
        %1408 = vmatpush1.msra.mxu0 %v1256
        %1409 = vmatprep.subr.mxu0 0.0
        %1410 = vmatpush1.msra.mxu0 0.0
        %1411 = vmatprep.subr.mxu0 0.0
        %1412 = vmatpush1.msra.mxu0 0.0
        %1413 = vmatprep.subr.mxu0 0.0
        %1414 = vmatpush1.msra.mxu0 0.0
        %1415 = vmatprep.subr.mxu0 0.0
        %1416 = vmatpush1.msra.mxu0 0.0
        %1417 = vmatprep.subr.mxu0 0.0
        %1418 = vmatpush1.msra.mxu0 0.0
        %1419 = vmatprep.subr.mxu0 0.0
        %1420 = vmatpush1.msra.mxu0 0.0
        %1421 = vmatprep.subr.mxu0 0.0
        %1422 = vmatpush1.msra.mxu0 0.0
        %1423 = vmatprep.subr.mxu0 0.0
        %1424 = vmatpush1.msra.mxu0 0.0
        %1425 = vmatprep.subr.mxu0 0.0
        %1426 = vmatpush1.msra.mxu0 0.0
        %1427 = vmatprep.subr.mxu0 0.0
        %1428 = vmatpush1.msra.mxu0 0.0
        %1429 = vmatprep.subr.mxu0 0.0
        %1430 = vmatpush1.msra.mxu0 0.0
        %1431 = vmatprep.subr.mxu0 0.0
        %1432 = vmatpush1.msra.mxu0 0.0
        %1433 = vmatprep.subr.mxu0 0.0
        %1434 = vmatpush1.msra.mxu0 0.0
        %1435 = vmatprep.subr.mxu0 0.0
        %1436 = vmatpush1.msra.mxu0 0.0
        %1437 = vmatprep.subr.mxu0 0.0
        %1438 = vmatpush1.msra.mxu0 0.0
        %1439 = vmatprep.subr.mxu0 0.0
        %1440 = vmatpush1.msra.mxu0 0.0
        %1441 = vmatprep.subr.mxu0 0.0
        %1442 = vmatpush1.msra.mxu0 0.0
        %1443 = vmatprep.subr.mxu0 0.0
        %1444 = vmatpush1.msra.mxu0 0.0
        %1445 = vmatprep.subr.mxu0 0.0
        %1446 = vmatpush1.msra.mxu0 0.0
        %1447 = vmatprep.subr.mxu0 0.0
        %1448 = vmatpush1.msra.mxu0 0.0
        %1449 = vmatprep.subr.mxu0 0.0
        %1450 = vmatpush1.msra.mxu0 0.0
        %1451 = vmatprep.subr.mxu0 0.0
        %1452 = vmatpush1.msra.mxu0 0.0
        %1453 = vmatprep.subr.mxu0 0.0
        %1454 = vmatpush1.msra.mxu0 0.0
        %1455 = vmatprep.subr.mxu0 0.0
        %1456 = vmatpush1.msra.mxu0 0.0
        %1457 = vmatprep.subr.mxu0 0.0
        %1458 = vmatpush1.msra.mxu0 0.0
        %1459 = vmatprep.subr.mxu0 0.0
        %1460 = vmatpush1.msra.mxu0 0.0
        %1461 = vmatprep.subr.mxu0 0.0
        %1462 = vmatpush1.msra.mxu0 0.0
        %1463 = vmatprep.subr.mxu0 0.0
        %1464 = vmatpush1.msra.mxu0 0.0
        %1465 = vmatprep.subr.mxu0 0.0
        %1466 = vmatpush1.msra.mxu0 0.0
        %1467 = vmatprep.subr.mxu0 0.0
        %1468 = vmatpush1.msra.mxu0 0.0
        %1469 = vmatprep.subr.mxu0 0.0
        %1470 = vmatpush1.msra.mxu0 0.0
        %1471 = vmatprep.mubr.f32.mxu0 0.0
        %1472 = vmatmul.mubr.f32.gmra.mrb[0].mxu0 %v1405
        %v1473 = vpop.f32.mrb[0].mxu0
        %v1474 = vadd.f32 0.0, %v1473
        %v1475 = vpop.f32.mrb[0].mxu0
        %1476 = vdwg.mxu0
        %v1478 = vsel %vm876, %v1249, 0
        %1480 = vmatprep.subr.mxu0 0.0
        %1481 = vmatpush1.msra.mxu0 %v1257
        %1482 = vmatprep.subr.mxu0 0.0
        %1483 = vmatpush1.msra.mxu0 0.0
        %1484 = vmatprep.subr.mxu0 0.0
        %1485 = vmatpush1.msra.mxu0 0.0
        %1486 = vmatprep.subr.mxu0 0.0
        %1487 = vmatpush1.msra.mxu0 0.0
        %1488 = vmatprep.subr.mxu0 0.0
        %1489 = vmatpush1.msra.mxu0 0.0
        %1490 = vmatprep.subr.mxu0 0.0
        %1491 = vmatpush1.msra.mxu0 0.0
        %1492 = vmatprep.subr.mxu0 0.0
        %1493 = vmatpush1.msra.mxu0 0.0
        %1494 = vmatprep.subr.mxu0 0.0
        %1495 = vmatpush1.msra.mxu0 0.0
        %1496 = vmatprep.subr.mxu0 0.0
        %1497 = vmatpush1.msra.mxu0 0.0
        %1498 = vmatprep.subr.mxu0 0.0
        %1499 = vmatpush1.msra.mxu0 0.0
        %1500 = vmatprep.subr.mxu0 0.0
        %1501 = vmatpush1.msra.mxu0 0.0
        %1502 = vmatprep.subr.mxu0 0.0
        %1503 = vmatpush1.msra.mxu0 0.0
        %1504 = vmatprep.subr.mxu0 0.0
        %1505 = vmatpush1.msra.mxu0 0.0
        %1506 = vmatprep.subr.mxu0 0.0
        %1507 = vmatpush1.msra.mxu0 0.0
        %1508 = vmatprep.subr.mxu0 0.0
        %1509 = vmatpush1.msra.mxu0 0.0
        %1510 = vmatprep.subr.mxu0 0.0
        %1511 = vmatpush1.msra.mxu0 0.0
        %1512 = vmatprep.subr.mxu0 0.0
        %1513 = vmatpush1.msra.mxu0 0.0
        %1514 = vmatprep.subr.mxu0 0.0
        %1515 = vmatpush1.msra.mxu0 0.0
        %1516 = vmatprep.subr.mxu0 0.0
        %1517 = vmatpush1.msra.mxu0 0.0
        %1518 = vmatprep.subr.mxu0 0.0
        %1519 = vmatpush1.msra.mxu0 0.0
        %1520 = vmatprep.subr.mxu0 0.0
        %1521 = vmatpush1.msra.mxu0 0.0
        %1522 = vmatprep.subr.mxu0 0.0
        %1523 = vmatpush1.msra.mxu0 0.0
        %1524 = vmatprep.subr.mxu0 0.0
        %1525 = vmatpush1.msra.mxu0 0.0
        %1526 = vmatprep.subr.mxu0 0.0
        %1527 = vmatpush1.msra.mxu0 0.0
        %1528 = vmatprep.subr.mxu0 0.0
        %1529 = vmatpush1.msra.mxu0 0.0
        %1530 = vmatprep.subr.mxu0 0.0
        %1531 = vmatpush1.msra.mxu0 0.0
        %1532 = vmatprep.subr.mxu0 0.0
        %1533 = vmatpush1.msra.mxu0 0.0
        %1534 = vmatprep.subr.mxu0 0.0
        %1535 = vmatpush1.msra.mxu0 0.0
        %1536 = vmatprep.subr.mxu0 0.0
        %1537 = vmatpush1.msra.mxu0 0.0
        %1538 = vmatprep.subr.mxu0 0.0
        %1539 = vmatpush1.msra.mxu0 0.0
        %1540 = vmatprep.subr.mxu0 0.0
        %1541 = vmatpush1.msra.mxu0 0.0
        %1542 = vmatprep.subr.mxu0 0.0
        %1543 = vmatpush1.msra.mxu0 0.0
        %1544 = vmatprep.mubr.f32.mxu0 0.0
        %1545 = vmatmul.mubr.f32.gmra.mrb[0].mxu0 %v1478
        %v1546 = vpop.f32.mrb[0].mxu0
        %v1547 = vadd.f32 0.0, %v1546
        %v1548 = vpop.f32.mrb[0].mxu0
        %1549 = vdwg.mxu0
        %1550 = vst.msk [vmem:[#allocation5] sm:$0xff] %vm876, %v1328
        %1552 = vrot.lane.b32.xlu0 %v1401, 8
        %v1553 = vpop.permute.xlu0 %1552
        %vm1555 = vcmask 130112
        %1556 = vst.msk [vmem:[#allocation5] sm:$0xff] %vm1555, %v1553
        %1558 = vrot.lane.b32.xlu0 %v1474, 16
        %v1559 = vpop.permute.xlu0 %1558
        %vm1561 = vcmask 195712
        %1562 = vst.msk [vmem:[#allocation5] sm:$0xff] %vm1561, %v1559
        %1564 = vrot.lane.b32.xlu0 %v1547, 24
        %v1565 = vpop.permute.xlu0 %1564
        %vm1567 = vcmask 261312
        %1568 = vst.msk [vmem:[#allocation5] sm:$0xff] %vm1567, %v1565
        %v1569 = vld [vmem:[#allocation5] sm:$0xff]
        %v1570 = vld [vmem:[%s9] sm:$0xff]
        %v1571 = vld [vmem:[%s9 + $0x8] sm:$0xff]
        %v1572 = vld [vmem:[%s9 + $0x10] sm:$0xff]
        %v1573 = vld [vmem:[%s9 + $0x18] sm:$0xff]
        %v1574 = vld [vmem:[%s10] sm:$0x1]
        %v1576 = vlaneseq
        %v1577 = vshrl.u32 %v1576, 7
        %v1578 = vsub.s32 0, %v1577
        %v1579 = vrot.slane %v1574, %v1578
        %vm1581 = vcmask 261120
        %v1583 = vsel %vm1581, %v1569, 0
        %1585 = vmatprep.subr.mxu0 0.0
        %1586 = vmatpush1.msra.mxu0 %v1570
        %1587 = vmatprep.subr.mxu0 0.0
        %1588 = vmatpush1.msra.mxu0 %v1571
        %1589 = vmatprep.subr.mxu0 0.0
        %1590 = vmatpush1.msra.mxu0 %v1572
        %1591 = vmatprep.subr.mxu0 0.0
        %1592 = vmatpush1.msra.mxu0 %v1573
        %1593 = vmatprep.subr.mxu0 0.0
        %1594 = vmatpush1.msra.mxu0 0.0
        %1595 = vmatprep.subr.mxu0 0.0
        %1596 = vmatpush1.msra.mxu0 0.0
        %1597 = vmatprep.subr.mxu0 0.0
        %1598 = vmatpush1.msra.mxu0 0.0
        %1599 = vmatprep.subr.mxu0 0.0
        %1600 = vmatpush1.msra.mxu0 0.0
        %1601 = vmatprep.subr.mxu0 0.0
        %1602 = vmatpush1.msra.mxu0 0.0
        %1603 = vmatprep.subr.mxu0 0.0
        %1604 = vmatpush1.msra.mxu0 0.0
        %1605 = vmatprep.subr.mxu0 0.0
        %1606 = vmatpush1.msra.mxu0 0.0
        %1607 = vmatprep.subr.mxu0 0.0
        %1608 = vmatpush1.msra.mxu0 0.0
        %1609 = vmatprep.subr.mxu0 0.0
        %1610 = vmatpush1.msra.mxu0 0.0
        %1611 = vmatprep.subr.mxu0 0.0
        %1612 = vmatpush1.msra.mxu0 0.0
        %1613 = vmatprep.subr.mxu0 0.0
        %1614 = vmatpush1.msra.mxu0 0.0
        %1615 = vmatprep.subr.mxu0 0.0
        %1616 = vmatpush1.msra.mxu0 0.0
        %1617 = vmatprep.subr.mxu0 0.0
        %1618 = vmatpush1.msra.mxu0 0.0
        %1619 = vmatprep.subr.mxu0 0.0
        %1620 = vmatpush1.msra.mxu0 0.0
        %1621 = vmatprep.subr.mxu0 0.0
        %1622 = vmatpush1.msra.mxu0 0.0
        %1623 = vmatprep.subr.mxu0 0.0
        %1624 = vmatpush1.msra.mxu0 0.0
        %1625 = vmatprep.subr.mxu0 0.0
        %1626 = vmatpush1.msra.mxu0 0.0
        %1627 = vmatprep.subr.mxu0 0.0
        %1628 = vmatpush1.msra.mxu0 0.0
        %1629 = vmatprep.subr.mxu0 0.0
        %1630 = vmatpush1.msra.mxu0 0.0
        %1631 = vmatprep.subr.mxu0 0.0
        %1632 = vmatpush1.msra.mxu0 0.0
        %1633 = vmatprep.subr.mxu0 0.0
        %1634 = vmatpush1.msra.mxu0 0.0
        %1635 = vmatprep.subr.mxu0 0.0
        %1636 = vmatpush1.msra.mxu0 0.0
        %1637 = vmatprep.subr.mxu0 0.0
        %1638 = vmatpush1.msra.mxu0 0.0
        %1639 = vmatprep.subr.mxu0 0.0
        %1640 = vmatpush1.msra.mxu0 0.0
        %1641 = vmatprep.subr.mxu0 0.0
        %1642 = vmatpush1.msra.mxu0 0.0
        %1643 = vmatprep.subr.mxu0 0.0
        %1644 = vmatpush1.msra.mxu0 0.0
        %1645 = vmatprep.subr.mxu0 0.0
        %1646 = vmatpush1.msra.mxu0 0.0
        %1647 = vmatprep.subr.mxu0 0.0
        %1648 = vmatpush1.msra.mxu0 0.0
        %1649 = vmatprep.mubr.f32.mxu0 0.0
        %1650 = vmatmul.mubr.f32.gmra.mrb[0].mxu0 %v1583
        %v1651 = vpop.f32.mrb[0].mxu0
        %v1652 = vadd.f32 %v1579, %v1651
        %v1653 = vpop.f32.mrb[0].mxu0
        %1654 = vdwg.mxu0
        %1655 = vst.msk [vmem:[%s578] sm:$0xff] %vm1581, %v1652
        %s1656 = sand.u32 %s308, 1
        %s1657 = scalar_lea.sflag [#allocation8], %s1656
        %s1658 = sand.u32 %s308, 1
        %s1659 = smul.addr %s1658, 8
        %s1660 = scalar_lea.vmem [#allocation18], %s1659
        %s1661 = sand.u32 %s336, 1
        %s1662 = scalar_lea.sflag [#allocation20], %s1661
        %s1663 = sand.u32 %s336, 1
        %s1664 = smul.addr %s1663, 32
        %s1665 = scalar_lea.vmem [#allocation19], %s1664
        // Predicated region
        $region97: #{tpu_custom_call.1} parent=63 // pred_check
          %p1666 = pneg %p318
        $region98: #{tpu_custom_call.1} parent=63 // pred_check_branch
          %1668 = sbr.rel (%p1666) target = $region100
        $region99: #{tpu_custom_call.1} parent=63 // pred_region
          %s1670 = ssub.s32 128, 128
          %1671 = vsyncadd %s1657, %s1670
          %s1672 = sadd.s32 %s43, %s42
          %s1673 = smul.addr %s1672, 128
          %s1674 = scalar_lea.hbm %s11, %s1673
          %s1676 = sshll.u32 %s1660, 4
          %s1677 = int_to_ptr.vmem [resolvable:$true] %s1676
          %1679 = dma.vmem_to_hbm [thread:$0]  %s1677, 128, %s1674, %s1657
        $region100: #{tpu_custom_call.1} parent=63 // pred_fallthru
          _
        // Predicated region
        $region101: #{tpu_custom_call.1} parent=63 // pred_check
          %p1680 = pneg %p346
        $region102: #{tpu_custom_call.1} parent=63 // pred_check_branch
          %1682 = sbr.rel (%p1680) target = $region104
        $region103: #{tpu_custom_call.1} parent=63 // pred_region
          %s1684 = ssub.s32 512, 512
          %1685 = vsyncadd %s1662, %s1684
          %s1686 = smul.addr %s42, 4
          %s1687 = sadd.s32 %s43, %s1686
          %s1688 = smul.addr %s1687, 128
          %s1689 = scalar_lea.hbm %s12, %s1688
          %s1690 = sshll.u32 %s1665, 4
          %s1691 = int_to_ptr.vmem [resolvable:$true] %s1690
          %1696 = dma.vmem_to_hbm [thread:$0]  %s1691, 512, %s1689, %s1662, 128, 128, 8
        $region104: #{tpu_custom_call.1} parent=63 // pred_fallthru
          _
      $region64: #{tpu_custom_call.1} parent=5 // pred_fallthru
        _
      %p1697 = scmp.le.s32.totalorder 2, %s33
      // Predicated region
      $region105: #{tpu_custom_call.1} parent=5 // pred_check
        %p1698 = pneg %p1697
      $region106: #{tpu_custom_call.1} parent=5 // pred_check_branch
        %1700 = sbr.rel (%p1698) target = $region108
      $region107: #{tpu_custom_call.1} parent=5 // pred_region
        %s1701 = ssub.s32 %s33, 2
        // Predicated region
        $region109: #{tpu_custom_call.1} parent=107 // pred_check
          %p1702 = pneg %p324
        $region110: #{tpu_custom_call.1} parent=107 // pred_check_branch
          %1704 = sbr.rel (%p1702) target = $region112
        $region111: #{tpu_custom_call.1} parent=107 // pred_region
          %s1705 = sand.u32 %s309, 1
          %s1706 = scalar_lea.sflag [#allocation8], %s1705
          %s1707 = sand.u32 %s309, 1
          %s1708 = smul.addr %s1707, 8
          %s1709 = scalar_lea.vmem [#allocation18], %s1708
          %1710 = dma.done %s1706, 128
        $region112: #{tpu_custom_call.1} parent=107 // pred_fallthru
          _
        // Predicated region
        $region113: #{tpu_custom_call.1} parent=107 // pred_check
          %p1711 = pneg %p352
        $region114: #{tpu_custom_call.1} parent=107 // pred_check_branch
          %1713 = sbr.rel (%p1711) target = $region116
        $region115: #{tpu_custom_call.1} parent=107 // pred_region
          %s1714 = sand.u32 %s337, 1
          %s1715 = scalar_lea.sflag [#allocation20], %s1714
          %s1716 = sand.u32 %s337, 1
          %s1717 = smul.addr %s1716, 32
          %s1718 = scalar_lea.vmem [#allocation19], %s1717
          %1719 = dma.done %s1715, 512
        $region116: #{tpu_custom_call.1} parent=107 // pred_fallthru
          _
      $region108: #{tpu_custom_call.1} parent=5 // pred_fallthru
        _
    $region6: #{tpu_custom_call.1} parent=1 // loop_footer
      %s37 = sadd.s32 1, %s33
    $region7: #{tpu_custom_call.1} parent=1 // loop_footer_branch
      %32 = sbr.rel target = $region3
    $region8: #{tpu_custom_call.1} parent=1 // loop_exit
      _
    %1720 = vsyncpa [#allocation7], 1
    %s1721 = scalar_lea.sflag [#allocation7], 1
    %1722 = vsyncpa %s1721, 1
    %1723 = vsyncpa [#allocation10], 1
    %s1724 = scalar_lea.sflag [#allocation10], 1
    %1725 = vsyncpa %s1724, 1
    %1726 = vsyncpa [#allocation13], 1
    %1727 = vsyncpa [#allocation16], 1
    %1728 = vsyncpa [#allocation8], 1
    %s1729 = scalar_lea.sflag [#allocation8], 1
    %1730 = vsyncpa %s1729, 1
    %1731 = vsyncpa [#allocation20], 1
    %s1732 = scalar_lea.sflag [#allocation20], 1
    %1733 = vsyncpa %s1732, 1

</llo_original>
